<compile_context>
chip_gen: v6e
topology: v6e:2x2x1
jax: 0.10.0
libtpu: 0.0.40
codegen_flags: <defaults>
</compile_context>

<pallas_src>
import numpy as np

import jax
import jax.numpy as jnp
from jax.experimental import pallas as pl
from jax.experimental.pallas import tpu as pltpu


# ----------------------------------------------------------------------------
# Static conv geometry helper.
# ----------------------------------------------------------------------------
def _conv_out(n, k, s):
    return (n - k) // s + 1


# ----------------------------------------------------------------------------
# The single fused Pallas kernel (built from a static per-layer config).
# ----------------------------------------------------------------------------
def _make_discriminator_kernel(cfgs):
    """cfgs: tuple of dicts with static fields: k (taps per axis), bn, act."""

    def kernel(*refs):
        out_ref = refs[-1]
        in_refs = refs[:-1]

        # Activation carried as [B*H, W*C] f32 (rows=(b,h), lanes=(w,c)).
        a = in_refs[0][...]
        pos = 1
        for cfg in cfgs:
            sh_ref = in_refs[pos]       # [k, B*Ho, B*H]        bf16 0/1 row select
            m_ref = in_refs[pos + 1]    # [k*W*Cin, Wo*Cout]    bf16 weights (W-taps folded)
            b_ref = in_refs[pos + 2]    # [1, Wo*Cout]          f32 bias (tiled over wo)
            pos += 3
            if cfg["bn"]:
                p_ref = in_refs[pos]        # [Wo*Cout, Wo*Cout] f32 channel-pool matrix
                g_ref = in_refs[pos + 1]    # [1, Wo*Cout]       gamma (tiled)
                be_ref = in_refs[pos + 2]   # [1, Wo*Cout]       beta  (tiled)
                pos += 3

            k = cfg["k"]
            a_bf = a.astype(jnp.bfloat16)

            # Row selection for each vertical tap offset i (exact 0/1 matmul,
            # a few hundred KFLOP), then ONE fused-K GEMM per layer.
            rows = [
                jnp.dot(sh_ref[i], a_bf, preferred_element_type=jnp.float32)
                for i in range(k)
            ]
            arows = jnp.concatenate(rows, axis=1).astype(jnp.bfloat16)  # [B*Ho, k*W*Cin]
            y = jnp.dot(arows, m_ref[...],
                        preferred_element_type=jnp.float32)            # [B*Ho, Wo*Cout]
            y = y + b_ref[...]

            if cfg["bn"]:
                # BatchNorm2d train-mode: per-channel stats over all (b,ho,wo).
                # Rows reduce = sublane reduce; pooling over wo (within lanes)
                # is one tiny [1,K]x[K,K] f32 matmul with a constant matrix.
                inv_rows = 1.0 / y.shape[0]
                mu = jnp.dot(jnp.sum(y, axis=0, keepdims=True) * inv_rows,
                             p_ref[...])                                # [1, Wo*Cout]
                d = y - mu
                var = jnp.dot(jnp.sum(d * d, axis=0, keepdims=True) * inv_rows,
                              p_ref[...])
                scale = g_ref[...] * jax.lax.rsqrt(var + 1e-5)
                y = d * scale + be_ref[...]

            if cfg["act"] == "leaky":
                a = jnp.maximum(y, 0.2 * y)              # LeakyReLU(0.2)
            else:
                a = 1.0 / (1.0 + jnp.exp(-y))            # Sigmoid

        out_ref[...] = a                                  # [B, 1]

    return kernel


# ----------------------------------------------------------------------------
# Parameters.
# ----------------------------------------------------------------------------
def init_params(key, image_nc=3):
    ks = jax.random.split(key, 8)

    def w(k_, shape):  # HWIO conv weights
        return 0.1 * jax.random.normal(k_, shape, jnp.float32)

    return {
        "w1": w(ks[0], (4, 4, image_nc, 8)),
        "b1": 0.05 * jax.random.normal(ks[1], (8,), jnp.float32),
        "w2": w(ks[2], (4, 4, 8, 16)),
        "b2": 0.05 * jax.random.normal(ks[3], (16,), jnp.float32),
        "g2": jnp.ones((16,), jnp.float32), "be2": jnp.zeros((16,), jnp.float32),
        "w3": w(ks[4], (4, 4, 16, 32)),
        "b3": 0.05 * jax.random.normal(ks[5], (32,), jnp.float32),
        "g3": jnp.ones((32,), jnp.float32), "be3": jnp.zeros((32,), jnp.float32),
        "w4": w(ks[6], (2, 2, 32, 1)),
        "b4": 0.05 * jax.random.normal(ks[7], (1,), jnp.float32),
    }


# ----------------------------------------------------------------------------
# Forward pass (single pallas_call).
# ----------------------------------------------------------------------------
@jax.jit
def discriminator_forward(x_nchw, params):
    B, C, H, W = x_nchw.shape
    # PyTorch NCHW -> lane-dense 2D [B*H, W*C] (rows=(b,h), lanes=(w,c)).
    a0 = jnp.transpose(x_nchw, (0, 2, 3, 1)).astype(jnp.float32).reshape(B * H, W * C)

    layer_defs = [
        dict(k=4, s=2, cin=C,  cout=8,  bn=False, act="leaky",   w="w1", b="b1"),
        dict(k=4, s=2, cin=8,  cout=16, bn=True,  act="leaky",   w="w2", b="b2", g="g2", be="be2"),
        dict(k=4, s=2, cin=16, cout=32, bn=True,  act="leaky",   w="w3", b="b3", g="g3", be="be3"),
        dict(k=2, s=1, cin=32, cout=1,  bn=False, act="sigmoid", w="w4", b="b4"),
    ]

    inputs = [a0]
    cfgs = []
    h, w_sp = H, W
    flops = 0
    bytes_accessed = a0.size * 4
    for ld in layer_defs:
        k, s, cin, cout = ld["k"], ld["s"], ld["cin"], ld["cout"]
        ho, wo = _conv_out(h, k, s), _conv_out(w_sp, k, s)

        # SH_i: 0/1 selector of input rows (b, s*ho + i) -> output rows (b, ho).
        sh = np.zeros((k, B * ho, B * h), np.float32)
        for i in range(k):
            for b in range(B):
                sh[i, b * ho + np.arange(ho), b * h + s * np.arange(ho) + i] = 1.0
        sh = jnp.asarray(sh, jnp.bfloat16)

        # M: W-direction tap selection folded into the conv weights.
        #    M[i, (w,c), (wo,n)] = weight[i, w - s*wo, c, n] (0 outside the tap).
        selw = np.zeros((k, w_sp, wo), np.float32)
        for j in range(k):
            selw[j, s * np.arange(wo) + j, np.arange(wo)] = 1.0
        wt = params[ld["w"]]                                           # HWIO
        m = jnp.einsum("jwv,ijcn->iwcvn", jnp.asarray(selw), wt)
        m = m.reshape(k * w_sp * cin, wo * cout).astype(jnp.bfloat16)  # fused-K weights

        bias_t = jnp.tile(params[ld["b"]].astype(jnp.float32), wo).reshape(1, wo * cout)
        inputs += [sh, m, bias_t]
        n_new = 3
        if ld["bn"]:
            pool = jnp.asarray(np.tile(np.eye(cout, dtype=np.float32), (wo, wo)) / wo)
            g_t = jnp.tile(params[ld["g"]].astype(jnp.float32), wo).reshape(1, wo * cout)
            be_t = jnp.tile(params[ld["be"]].astype(jnp.float32), wo).reshape(1, wo * cout)
            inputs += [pool, g_t, be_t]
            n_new = 6
        cfgs.append(dict(k=k, bn=ld["bn"], act=ld["act"]))

        # Actual in-kernel matmul FLOPs (row selectors + fused-K conv GEMM).
        flops += 2 * k * (B * ho) * (B * h) * (w_sp * cin)
        flops += 2 * (B * ho) * (k * w_sp * cin) * (wo * cout)
        for arr in inputs[-n_new:]:
            bytes_accessed += arr.size * arr.dtype.itemsize
        h, w_sp = ho, wo
    bytes_accessed += B * 4

    kernel = _make_discriminator_kernel(tuple(cfgs))
    vmem = pl.BlockSpec(memory_space=pltpu.MemorySpace.VMEM)
    out = pl.pallas_call(
        kernel,
        out_shape=jax.ShapeDtypeStruct((B, 1), jnp.float32),
        in_specs=[vmem] * len(inputs),
        out_specs=vmem,
        compiler_params=pltpu.CompilerParams(
            vmem_limit_bytes=16 * 1024 * 1024),
        cost_estimate=pl.CostEstimate(flops=int(flops),
                                      transcendentals=int(B),
                                      bytes_accessed=int(bytes_accessed)),
    )(*inputs)

    # .squeeze(): drops all singleton dims -> shape [B] for B > 1.
    return jnp.squeeze(out)


# ----------------------------------------------------------------------------
# Pure-JAX reference (same params, same train-mode BN) for a sanity check.
# ----------------------------------------------------------------------------
def _reference_forward(x_nchw, params):
    x = jnp.transpose(x_nchw, (0, 2, 3, 1)).astype(jnp.float32)

    def conv(a, w, b, s):
        y = jax.lax.conv_general_dilated(
            a, w, (s, s), "VALID", dimension_numbers=("NHWC", "HWIO", "NHWC"))
        return y + b

    def bn(y, g, be):
        mu = jnp.mean(y, axis=(0, 1, 2), keepdims=True)
        var = jnp.mean((y - mu) ** 2, axis=(0, 1, 2), keepdims=True)
        return (y - mu) * jax.lax.rsqrt(var + 1e-5) * g + be

    lrelu = lambda t: jnp.maximum(t, 0.2 * t)
    y = lrelu(conv(x, params["w1"], params["b1"], 2))
    y = lrelu(bn(conv(y, params["w2"], params["b2"], 2), params["g2"], params["be2"]))
    y = lrelu(bn(conv(y, params["w3"], params["b3"], 2), params["g3"], params["be3"]))
    y = jax.nn.sigmoid(conv(y, params["w4"], params["b4"], 1))
    return jnp.squeeze(y)


if __name__ == "__main__":
    key = jax.random.PRNGKey(0)
    k_x, k_p = jax.random.split(key)
    # Spatial size must be >= ~30 for this architecture (final conv is k=2 on a
    # 2x2 map); use the smallest natural size 32x32, batch=2, PyTorch NCHW.
    x = jax.random.normal(k_x, (2, 3, 32, 32), jnp.float32)
    params = init_params(k_p, image_nc=3)

    out = discriminator_forward(x, params)
    out = jax.block_until_ready(out)
    assert out.shape == (2,), out.shape
    assert bool(jnp.all(jnp.isfinite(out)))

    # bf16 MXU operands vs f32 reference: allow a loose tolerance on the
    # post-sigmoid outputs.
    ref = jax.block_until_ready(_reference_forward(x, params))
    assert float(jnp.max(jnp.abs(out - ref))) < 5e-2, (out, ref)

    print("KERNEL_OK")
</pallas_src>

<mosaic_0001>
module attributes {stable_mosaic.version = 11 : i64} {
  func.func @kernel(%arg0: memref<64x96xf32, #tpu.memory_space<vmem>>, %arg1: memref<4x30x64xbf16, #tpu.memory_space<vmem>>, %arg2: memref<384x120xbf16, #tpu.memory_space<vmem>>, %arg3: memref<1x120xf32, #tpu.memory_space<vmem>>, %arg4: memref<4x12x30xbf16, #tpu.memory_space<vmem>>, %arg5: memref<480x96xbf16, #tpu.memory_space<vmem>>, %arg6: memref<1x96xf32, #tpu.memory_space<vmem>>, %arg7: memref<96x96xf32, #tpu.memory_space<vmem>>, %arg8: memref<1x96xf32, #tpu.memory_space<vmem>>, %arg9: memref<1x96xf32, #tpu.memory_space<vmem>>, %arg10: memref<4x4x12xbf16, #tpu.memory_space<vmem>>, %arg11: memref<384x64xbf16, #tpu.memory_space<vmem>>, %arg12: memref<1x64xf32, #tpu.memory_space<vmem>>, %arg13: memref<64x64xf32, #tpu.memory_space<vmem>>, %arg14: memref<1x64xf32, #tpu.memory_space<vmem>>, %arg15: memref<1x64xf32, #tpu.memory_space<vmem>>, %arg16: memref<2x2x4xbf16, #tpu.memory_space<vmem>>, %arg17: memref<128x1xbf16, #tpu.memory_space<vmem>>, %arg18: memref<1x1xf32, #tpu.memory_space<vmem>>, %arg19: memref<2x1xf32, #tpu.memory_space<vmem>>) attributes {dimension_semantics = [], scalar_prefetch = 0 : i64, scratch_operands = 0 : i64, tpu.core_type = #tpu.core_type<tc>} {
    %c0 = arith.constant 0 : index
    %c0_0 = arith.constant 0 : index
    %0 = vector.load %arg0[%c0, %c0_0] : memref<64x96xf32, #tpu.memory_space<vmem>>, vector<64x96xf32>
    %1 = arith.truncf %0 : vector<64x96xf32> to vector<64x96xbf16>
    %c0_1 = arith.constant 0 : index
    %c0_2 = arith.constant 0 : index
    %c0_3 = arith.constant 0 : index
    %2 = vector.load %arg1[%c0_1, %c0_2, %c0_3] : memref<4x30x64xbf16, #tpu.memory_space<vmem>>, vector<1x30x64xbf16>
    %3 = vector.shape_cast %2 : vector<1x30x64xbf16> to vector<30x64xbf16>
    %cst = arith.constant dense<0.000000e+00> : vector<30x96xf32>
    %4 = tpu.matmul %3, %1, %cst {dimension_numbers = #tpu.dot_dimension_numbers<[1], [0], [0], [1], [0, 0, 1, 1], [], []>} : vector<30x64xbf16>, vector<64x96xbf16>, vector<30x96xf32> -> vector<30x96xf32>
    %c1 = arith.constant 1 : index
    %c0_4 = arith.constant 0 : index
    %c0_5 = arith.constant 0 : index
    %5 = vector.load %arg1[%c1, %c0_4, %c0_5] : memref<4x30x64xbf16, #tpu.memory_space<vmem>>, vector<1x30x64xbf16>
    %6 = vector.shape_cast %5 : vector<1x30x64xbf16> to vector<30x64xbf16>
    %cst_6 = arith.constant dense<0.000000e+00> : vector<30x96xf32>
    %7 = tpu.matmul %6, %1, %cst_6 {dimension_numbers = #tpu.dot_dimension_numbers<[1], [0], [0], [1], [0, 0, 1, 1], [], []>} : vector<30x64xbf16>, vector<64x96xbf16>, vector<30x96xf32> -> vector<30x96xf32>
    %c2 = arith.constant 2 : index
    %c0_7 = arith.constant 0 : index
    %c0_8 = arith.constant 0 : index
    %8 = vector.load %arg1[%c2, %c0_7, %c0_8] : memref<4x30x64xbf16, #tpu.memory_space<vmem>>, vector<1x30x64xbf16>
    %9 = vector.shape_cast %8 : vector<1x30x64xbf16> to vector<30x64xbf16>
    %cst_9 = arith.constant dense<0.000000e+00> : vector<30x96xf32>
    %10 = tpu.matmul %9, %1, %cst_9 {dimension_numbers = #tpu.dot_dimension_numbers<[1], [0], [0], [1], [0, 0, 1, 1], [], []>} : vector<30x64xbf16>, vector<64x96xbf16>, vector<30x96xf32> -> vector<30x96xf32>
    %c3 = arith.constant 3 : index
    %c0_10 = arith.constant 0 : index
    %c0_11 = arith.constant 0 : index
    %11 = vector.load %arg1[%c3, %c0_10, %c0_11] : memref<4x30x64xbf16, #tpu.memory_space<vmem>>, vector<1x30x64xbf16>
    %12 = vector.shape_cast %11 : vector<1x30x64xbf16> to vector<30x64xbf16>
    %cst_12 = arith.constant dense<0.000000e+00> : vector<30x96xf32>
    %13 = tpu.matmul %12, %1, %cst_12 {dimension_numbers = #tpu.dot_dimension_numbers<[1], [0], [0], [1], [0, 0, 1, 1], [], []>} : vector<30x64xbf16>, vector<64x96xbf16>, vector<30x96xf32> -> vector<30x96xf32>
    %14 = tpu.concatenate %4, %7, %10, %13 in 1 : vector<30x96xf32>, vector<30x96xf32>, vector<30x96xf32>, vector<30x96xf32> -> vector<30x384xf32>
    %15 = arith.truncf %14 : vector<30x384xf32> to vector<30x384xbf16>
    %c0_13 = arith.constant 0 : index
    %c0_14 = arith.constant 0 : index
    %16 = vector.load %arg2[%c0_13, %c0_14] : memref<384x120xbf16, #tpu.memory_space<vmem>>, vector<384x120xbf16>
    %cst_15 = arith.constant dense<0.000000e+00> : vector<30x120xf32>
    %17 = tpu.matmul %15, %16, %cst_15 {dimension_numbers = #tpu.dot_dimension_numbers<[1], [0], [0], [1], [0, 0, 1, 1], [], []>} : vector<30x384xbf16>, vector<384x120xbf16>, vector<30x120xf32> -> vector<30x120xf32>
    %c0_16 = arith.constant 0 : index
    %c0_17 = arith.constant 0 : index
    %18 = vector.load %arg3[%c0_16, %c0_17] : memref<1x120xf32, #tpu.memory_space<vmem>>, vector<1x120xf32>
    %19 = vector.broadcast %18 : vector<1x120xf32> to vector<30x120xf32>
    %20 = arith.addf %17, %19 : vector<30x120xf32>
    %cst_18 = arith.constant 2.000000e-01 : f32
    %21 = vector.broadcast %cst_18 : f32 to vector<30x120xf32>
    %22 = arith.mulf %21, %20 : vector<30x120xf32>
    %23 = arith.maximumf %20, %22 : vector<30x120xf32>
    %24 = arith.truncf %23 : vector<30x120xf32> to vector<30x120xbf16>
    %c0_19 = arith.constant 0 : index
    %c0_20 = arith.constant 0 : index
    %c0_21 = arith.constant 0 : index
    %25 = vector.load %arg4[%c0_19, %c0_20, %c0_21] : memref<4x12x30xbf16, #tpu.memory_space<vmem>>, vector<1x12x30xbf16>
    %26 = vector.shape_cast %25 : vector<1x12x30xbf16> to vector<12x30xbf16>
    %cst_22 = arith.constant dense<0.000000e+00> : vector<12x120xf32>
    %27 = tpu.matmul %26, %24, %cst_22 {dimension_numbers = #tpu.dot_dimension_numbers<[1], [0], [0], [1], [0, 0, 1, 1], [], []>} : vector<12x30xbf16>, vector<30x120xbf16>, vector<12x120xf32> -> vector<12x120xf32>
    %c1_23 = arith.constant 1 : index
    %c0_24 = arith.constant 0 : index
    %c0_25 = arith.constant 0 : index
    %28 = vector.load %arg4[%c1_23, %c0_24, %c0_25] : memref<4x12x30xbf16, #tpu.memory_space<vmem>>, vector<1x12x30xbf16>
    %29 = vector.shape_cast %28 : vector<1x12x30xbf16> to vector<12x30xbf16>
    %cst_26 = arith.constant dense<0.000000e+00> : vector<12x120xf32>
    %30 = tpu.matmul %29, %24, %cst_26 {dimension_numbers = #tpu.dot_dimension_numbers<[1], [0], [0], [1], [0, 0, 1, 1], [], []>} : vector<12x30xbf16>, vector<30x120xbf16>, vector<12x120xf32> -> vector<12x120xf32>
    %c2_27 = arith.constant 2 : index
    %c0_28 = arith.constant 0 : index
    %c0_29 = arith.constant 0 : index
    %31 = vector.load %arg4[%c2_27, %c0_28, %c0_29] : memref<4x12x30xbf16, #tpu.memory_space<vmem>>, vector<1x12x30xbf16>
    %32 = vector.shape_cast %31 : vector<1x12x30xbf16> to vector<12x30xbf16>
    %cst_30 = arith.constant dense<0.000000e+00> : vector<12x120xf32>
    %33 = tpu.matmul %32, %24, %cst_30 {dimension_numbers = #tpu.dot_dimension_numbers<[1], [0], [0], [1], [0, 0, 1, 1], [], []>} : vector<12x30xbf16>, vector<30x120xbf16>, vector<12x120xf32> -> vector<12x120xf32>
    %c3_31 = arith.constant 3 : index
    %c0_32 = arith.constant 0 : index
    %c0_33 = arith.constant 0 : index
    %34 = vector.load %arg4[%c3_31, %c0_32, %c0_33] : memref<4x12x30xbf16, #tpu.memory_space<vmem>>, vector<1x12x30xbf16>
    %35 = vector.shape_cast %34 : vector<1x12x30xbf16> to vector<12x30xbf16>
    %cst_34 = arith.constant dense<0.000000e+00> : vector<12x120xf32>
    %36 = tpu.matmul %35, %24, %cst_34 {dimension_numbers = #tpu.dot_dimension_numbers<[1], [0], [0], [1], [0, 0, 1, 1], [], []>} : vector<12x30xbf16>, vector<30x120xbf16>, vector<12x120xf32> -> vector<12x120xf32>
    %37 = tpu.concatenate %27, %30, %33, %36 in 1 : vector<12x120xf32>, vector<12x120xf32>, vector<12x120xf32>, vector<12x120xf32> -> vector<12x480xf32>
    %38 = arith.truncf %37 : vector<12x480xf32> to vector<12x480xbf16>
    %c0_35 = arith.constant 0 : index
    %c0_36 = arith.constant 0 : index
    %39 = vector.load %arg5[%c0_35, %c0_36] : memref<480x96xbf16, #tpu.memory_space<vmem>>, vector<480x96xbf16>
    %cst_37 = arith.constant dense<0.000000e+00> : vector<12x96xf32>
    %40 = tpu.matmul %38, %39, %cst_37 {dimension_numbers = #tpu.dot_dimension_numbers<[1], [0], [0], [1], [0, 0, 1, 1], [], []>} : vector<12x480xbf16>, vector<480x96xbf16>, vector<12x96xf32> -> vector<12x96xf32>
    %c0_38 = arith.constant 0 : index
    %c0_39 = arith.constant 0 : index
    %41 = vector.load %arg6[%c0_38, %c0_39] : memref<1x96xf32, #tpu.memory_space<vmem>>, vector<1x96xf32>
    %42 = vector.broadcast %41 : vector<1x96xf32> to vector<12x96xf32>
    %43 = arith.addf %40, %42 : vector<12x96xf32>
    %cst_40 = arith.constant dense<0.000000e+00> : vector<96xf32>
    %44 = vector.multi_reduction <add>, %43, %cst_40 [0] : vector<12x96xf32> to vector<96xf32>
    %45 = vector.shape_cast %44 : vector<96xf32> to vector<1x96xf32>
    %cst_41 = arith.constant 0.0833333358 : f32
    %46 = vector.broadcast %cst_41 : f32 to vector<1x96xf32>
    %47 = arith.mulf %45, %46 : vector<1x96xf32>
    %c0_42 = arith.constant 0 : index
    %c0_43 = arith.constant 0 : index
    %48 = vector.load %arg7[%c0_42, %c0_43] : memref<96x96xf32, #tpu.memory_space<vmem>>, vector<96x96xf32>
    %cst_44 = arith.constant dense<0.000000e+00> : vector<1x96xf32>
    %49 = tpu.matmul %47, %48, %cst_44 {dimension_numbers = #tpu.dot_dimension_numbers<[1], [0], [0], [1], [0, 0, 1, 1], [], []>} : vector<1x96xf32>, vector<96x96xf32>, vector<1x96xf32> -> vector<1x96xf32>
    %50 = vector.broadcast %49 : vector<1x96xf32> to vector<12x96xf32>
    %51 = arith.subf %43, %50 : vector<12x96xf32>
    %52 = arith.mulf %51, %51 : vector<12x96xf32>
    %cst_45 = arith.constant dense<0.000000e+00> : vector<96xf32>
    %53 = vector.multi_reduction <add>, %52, %cst_45 [0] : vector<12x96xf32> to vector<96xf32>
    %54 = vector.shape_cast %53 : vector<96xf32> to vector<1x96xf32>
    %cst_46 = arith.constant 0.0833333358 : f32
    %55 = vector.broadcast %cst_46 : f32 to vector<1x96xf32>
    %56 = arith.mulf %54, %55 : vector<1x96xf32>
    %c0_47 = arith.constant 0 : index
    %c0_48 = arith.constant 0 : index
    %57 = vector.load %arg7[%c0_47, %c0_48] : memref<96x96xf32, #tpu.memory_space<vmem>>, vector<96x96xf32>
    %cst_49 = arith.constant dense<0.000000e+00> : vector<1x96xf32>
    %58 = tpu.matmul %56, %57, %cst_49 {dimension_numbers = #tpu.dot_dimension_numbers<[1], [0], [0], [1], [0, 0, 1, 1], [], []>} : vector<1x96xf32>, vector<96x96xf32>, vector<1x96xf32> -> vector<1x96xf32>
    %c0_50 = arith.constant 0 : index
    %c0_51 = arith.constant 0 : index
    %59 = vector.load %arg8[%c0_50, %c0_51] : memref<1x96xf32, #tpu.memory_space<vmem>>, vector<1x96xf32>
    %cst_52 = arith.constant 9.99999974E-6 : f32
    %60 = vector.broadcast %cst_52 : f32 to vector<1x96xf32>
    %61 = arith.addf %58, %60 : vector<1x96xf32>
    %62 = math.rsqrt %61 : vector<1x96xf32>
    %63 = arith.mulf %59, %62 : vector<1x96xf32>
    %64 = vector.broadcast %63 : vector<1x96xf32> to vector<12x96xf32>
    %65 = arith.mulf %51, %64 : vector<12x96xf32>
    %c0_53 = arith.constant 0 : index
    %c0_54 = arith.constant 0 : index
    %66 = vector.load %arg9[%c0_53, %c0_54] : memref<1x96xf32, #tpu.memory_space<vmem>>, vector<1x96xf32>
    %67 = vector.broadcast %66 : vector<1x96xf32> to vector<12x96xf32>
    %68 = arith.addf %65, %67 : vector<12x96xf32>
    %cst_55 = arith.constant 2.000000e-01 : f32
    %69 = vector.broadcast %cst_55 : f32 to vector<12x96xf32>
    %70 = arith.mulf %69, %68 : vector<12x96xf32>
    %71 = arith.maximumf %68, %70 : vector<12x96xf32>
    %72 = arith.truncf %71 : vector<12x96xf32> to vector<12x96xbf16>
    %c0_56 = arith.constant 0 : index
    %c0_57 = arith.constant 0 : index
    %c0_58 = arith.constant 0 : index
    %73 = vector.load %arg10[%c0_56, %c0_57, %c0_58] : memref<4x4x12xbf16, #tpu.memory_space<vmem>>, vector<1x4x12xbf16>
    %74 = vector.shape_cast %73 : vector<1x4x12xbf16> to vector<4x12xbf16>
    %cst_59 = arith.constant dense<0.000000e+00> : vector<4x96xf32>
    %75 = tpu.matmul %74, %72, %cst_59 {dimension_numbers = #tpu.dot_dimension_numbers<[1], [0], [0], [1], [0, 0, 1, 1], [], []>} : vector<4x12xbf16>, vector<12x96xbf16>, vector<4x96xf32> -> vector<4x96xf32>
    %c1_60 = arith.constant 1 : index
    %c0_61 = arith.constant 0 : index
    %c0_62 = arith.constant 0 : index
    %76 = vector.load %arg10[%c1_60, %c0_61, %c0_62] : memref<4x4x12xbf16, #tpu.memory_space<vmem>>, vector<1x4x12xbf16>
    %77 = vector.shape_cast %76 : vector<1x4x12xbf16> to vector<4x12xbf16>
    %cst_63 = arith.constant dense<0.000000e+00> : vector<4x96xf32>
    %78 = tpu.matmul %77, %72, %cst_63 {dimension_numbers = #tpu.dot_dimension_numbers<[1], [0], [0], [1], [0, 0, 1, 1], [], []>} : vector<4x12xbf16>, vector<12x96xbf16>, vector<4x96xf32> -> vector<4x96xf32>
    %c2_64 = arith.constant 2 : index
    %c0_65 = arith.constant 0 : index
    %c0_66 = arith.constant 0 : index
    %79 = vector.load %arg10[%c2_64, %c0_65, %c0_66] : memref<4x4x12xbf16, #tpu.memory_space<vmem>>, vector<1x4x12xbf16>
    %80 = vector.shape_cast %79 : vector<1x4x12xbf16> to vector<4x12xbf16>
    %cst_67 = arith.constant dense<0.000000e+00> : vector<4x96xf32>
    %81 = tpu.matmul %80, %72, %cst_67 {dimension_numbers = #tpu.dot_dimension_numbers<[1], [0], [0], [1], [0, 0, 1, 1], [], []>} : vector<4x12xbf16>, vector<12x96xbf16>, vector<4x96xf32> -> vector<4x96xf32>
    %c3_68 = arith.constant 3 : index
    %c0_69 = arith.constant 0 : index
    %c0_70 = arith.constant 0 : index
    %82 = vector.load %arg10[%c3_68, %c0_69, %c0_70] : memref<4x4x12xbf16, #tpu.memory_space<vmem>>, vector<1x4x12xbf16>
    %83 = vector.shape_cast %82 : vector<1x4x12xbf16> to vector<4x12xbf16>
    %cst_71 = arith.constant dense<0.000000e+00> : vector<4x96xf32>
    %84 = tpu.matmul %83, %72, %cst_71 {dimension_numbers = #tpu.dot_dimension_numbers<[1], [0], [0], [1], [0, 0, 1, 1], [], []>} : vector<4x12xbf16>, vector<12x96xbf16>, vector<4x96xf32> -> vector<4x96xf32>
    %85 = tpu.concatenate %75, %78, %81, %84 in 1 : vector<4x96xf32>, vector<4x96xf32>, vector<4x96xf32>, vector<4x96xf32> -> vector<4x384xf32>
    %86 = arith.truncf %85 : vector<4x384xf32> to vector<4x384xbf16>
    %c0_72 = arith.constant 0 : index
    %c0_73 = arith.constant 0 : index
    %87 = vector.load %arg11[%c0_72, %c0_73] : memref<384x64xbf16, #tpu.memory_space<vmem>>, vector<384x64xbf16>
    %cst_74 = arith.constant dense<0.000000e+00> : vector<4x64xf32>
    %88 = tpu.matmul %86, %87, %cst_74 {dimension_numbers = #tpu.dot_dimension_numbers<[1], [0], [0], [1], [0, 0, 1, 1], [], []>} : vector<4x384xbf16>, vector<384x64xbf16>, vector<4x64xf32> -> vector<4x64xf32>
    %c0_75 = arith.constant 0 : index
    %c0_76 = arith.constant 0 : index
    %89 = vector.load %arg12[%c0_75, %c0_76] : memref<1x64xf32, #tpu.memory_space<vmem>>, vector<1x64xf32>
    %90 = vector.broadcast %89 : vector<1x64xf32> to vector<4x64xf32>
    %91 = arith.addf %88, %90 : vector<4x64xf32>
    %cst_77 = arith.constant dense<0.000000e+00> : vector<64xf32>
    %92 = vector.multi_reduction <add>, %91, %cst_77 [0] : vector<4x64xf32> to vector<64xf32>
    %93 = vector.shape_cast %92 : vector<64xf32> to vector<1x64xf32>
    %cst_78 = arith.constant 2.500000e-01 : f32
    %94 = vector.broadcast %cst_78 : f32 to vector<1x64xf32>
    %95 = arith.mulf %93, %94 : vector<1x64xf32>
    %c0_79 = arith.constant 0 : index
    %c0_80 = arith.constant 0 : index
    %96 = vector.load %arg13[%c0_79, %c0_80] : memref<64x64xf32, #tpu.memory_space<vmem>>, vector<64x64xf32>
    %cst_81 = arith.constant dense<0.000000e+00> : vector<1x64xf32>
    %97 = tpu.matmul %95, %96, %cst_81 {dimension_numbers = #tpu.dot_dimension_numbers<[1], [0], [0], [1], [0, 0, 1, 1], [], []>} : vector<1x64xf32>, vector<64x64xf32>, vector<1x64xf32> -> vector<1x64xf32>
    %98 = vector.broadcast %97 : vector<1x64xf32> to vector<4x64xf32>
    %99 = arith.subf %91, %98 : vector<4x64xf32>
    %100 = arith.mulf %99, %99 : vector<4x64xf32>
    %cst_82 = arith.constant dense<0.000000e+00> : vector<64xf32>
    %101 = vector.multi_reduction <add>, %100, %cst_82 [0] : vector<4x64xf32> to vector<64xf32>
    %102 = vector.shape_cast %101 : vector<64xf32> to vector<1x64xf32>
    %cst_83 = arith.constant 2.500000e-01 : f32
    %103 = vector.broadcast %cst_83 : f32 to vector<1x64xf32>
    %104 = arith.mulf %102, %103 : vector<1x64xf32>
    %c0_84 = arith.constant 0 : index
    %c0_85 = arith.constant 0 : index
    %105 = vector.load %arg13[%c0_84, %c0_85] : memref<64x64xf32, #tpu.memory_space<vmem>>, vector<64x64xf32>
    %cst_86 = arith.constant dense<0.000000e+00> : vector<1x64xf32>
    %106 = tpu.matmul %104, %105, %cst_86 {dimension_numbers = #tpu.dot_dimension_numbers<[1], [0], [0], [1], [0, 0, 1, 1], [], []>} : vector<1x64xf32>, vector<64x64xf32>, vector<1x64xf32> -> vector<1x64xf32>
    %c0_87 = arith.constant 0 : index
    %c0_88 = arith.constant 0 : index
    %107 = vector.load %arg14[%c0_87, %c0_88] : memref<1x64xf32, #tpu.memory_space<vmem>>, vector<1x64xf32>
    %cst_89 = arith.constant 9.99999974E-6 : f32
    %108 = vector.broadcast %cst_89 : f32 to vector<1x64xf32>
    %109 = arith.addf %106, %108 : vector<1x64xf32>
    %110 = math.rsqrt %109 : vector<1x64xf32>
    %111 = arith.mulf %107, %110 : vector<1x64xf32>
    %112 = vector.broadcast %111 : vector<1x64xf32> to vector<4x64xf32>
    %113 = arith.mulf %99, %112 : vector<4x64xf32>
    %c0_90 = arith.constant 0 : index
    %c0_91 = arith.constant 0 : index
    %114 = vector.load %arg15[%c0_90, %c0_91] : memref<1x64xf32, #tpu.memory_space<vmem>>, vector<1x64xf32>
    %115 = vector.broadcast %114 : vector<1x64xf32> to vector<4x64xf32>
    %116 = arith.addf %113, %115 : vector<4x64xf32>
    %cst_92 = arith.constant 2.000000e-01 : f32
    %117 = vector.broadcast %cst_92 : f32 to vector<4x64xf32>
    %118 = arith.mulf %117, %116 : vector<4x64xf32>
    %119 = arith.maximumf %116, %118 : vector<4x64xf32>
    %120 = arith.truncf %119 : vector<4x64xf32> to vector<4x64xbf16>
    %c0_93 = arith.constant 0 : index
    %c0_94 = arith.constant 0 : index
    %c0_95 = arith.constant 0 : index
    %121 = vector.load %arg16[%c0_93, %c0_94, %c0_95] : memref<2x2x4xbf16, #tpu.memory_space<vmem>>, vector<1x2x4xbf16>
    %122 = vector.shape_cast %121 : vector<1x2x4xbf16> to vector<2x4xbf16>
    %cst_96 = arith.constant dense<0.000000e+00> : vector<2x64xf32>
    %123 = tpu.matmul %122, %120, %cst_96 {dimension_numbers = #tpu.dot_dimension_numbers<[1], [0], [0], [1], [0, 0, 1, 1], [], []>} : vector<2x4xbf16>, vector<4x64xbf16>, vector<2x64xf32> -> vector<2x64xf32>
    %c1_97 = arith.constant 1 : index
    %c0_98 = arith.constant 0 : index
    %c0_99 = arith.constant 0 : index
    %124 = vector.load %arg16[%c1_97, %c0_98, %c0_99] : memref<2x2x4xbf16, #tpu.memory_space<vmem>>, vector<1x2x4xbf16>
    %125 = vector.shape_cast %124 : vector<1x2x4xbf16> to vector<2x4xbf16>
    %cst_100 = arith.constant dense<0.000000e+00> : vector<2x64xf32>
    %126 = tpu.matmul %125, %120, %cst_100 {dimension_numbers = #tpu.dot_dimension_numbers<[1], [0], [0], [1], [0, 0, 1, 1], [], []>} : vector<2x4xbf16>, vector<4x64xbf16>, vector<2x64xf32> -> vector<2x64xf32>
    %127 = tpu.concatenate %123, %126 in 1 : vector<2x64xf32>, vector<2x64xf32> -> vector<2x128xf32>
    %128 = arith.truncf %127 : vector<2x128xf32> to vector<2x128xbf16>
    %c0_101 = arith.constant 0 : index
    %c0_102 = arith.constant 0 : index
    %129 = vector.load %arg17[%c0_101, %c0_102] : memref<128x1xbf16, #tpu.memory_space<vmem>>, vector<128x1xbf16>
    %cst_103 = arith.constant dense<0.000000e+00> : vector<2x1xf32>
    %130 = tpu.matmul %128, %129, %cst_103 {dimension_numbers = #tpu.dot_dimension_numbers<[1], [0], [0], [1], [0, 0, 1, 1], [], []>} : vector<2x128xbf16>, vector<128x1xbf16>, vector<2x1xf32> -> vector<2x1xf32>
    %c0_104 = arith.constant 0 : index
    %c0_105 = arith.constant 0 : index
    %131 = vector.load %arg18[%c0_104, %c0_105] : memref<1x1xf32, #tpu.memory_space<vmem>>, vector<1x1xf32>
    %132 = vector.broadcast %131 : vector<1x1xf32> to vector<2x1xf32>
    %133 = arith.addf %130, %132 : vector<2x1xf32>
    %cst_106 = arith.constant 0.000000e+00 : f32
    %134 = vector.broadcast %cst_106 : f32 to vector<2x1xf32>
    %135 = arith.subf %134, %133 : vector<2x1xf32>
    %136 = math.exp %135 : vector<2x1xf32>
    %cst_107 = arith.constant 1.000000e+00 : f32
    %137 = vector.broadcast %cst_107 : f32 to vector<2x1xf32>
    %138 = arith.addf %137, %136 : vector<2x1xf32>
    %cst_108 = arith.constant 1.000000e+00 : f32
    %139 = vector.broadcast %cst_108 : f32 to vector<2x1xf32>
    %140 = arith.divf %139, %138 : vector<2x1xf32>
    %c0_109 = arith.constant 0 : index
    %c0_110 = arith.constant 0 : index
    %141 = vector.load %arg19[%c0_109, %c0_110] : memref<2x1xf32, #tpu.memory_space<vmem>>, vector<2x1xf32>
    tpu.vector_store %arg19[%c0_109, %c0_110], %140 {strides = array<i32>} : memref<2x1xf32, #tpu.memory_space<vmem>>, vector<2x1xf32>,
    return
  }
}

</mosaic_0001>

<llo_original>
// kernel: tile.39
$region0: #{tile.39}
  #allocation0 [shape = 's32[1]{0}', space=sflag, size = 0x4, scoped, tag = 'scoped memory for tile.39']
  %s0 = inlined_call_operand.vmem [shape: f32[8], index: 0, kind: input, shape index: {}]
  %s1 = inlined_call_operand.vmem [shape: f32[15,8], index: 1, kind: output, shape index: {}]
  // Predicated region
  $region2: #{tile.39} parent=0 // pred_check
    _
  $region3: #{tile.39} parent=0 // pred_check_branch
    %3 = sbr.rel (0) target = $region5
  $region4: #{tile.39} parent=0 // pred_region
    _
  $region5: #{tile.39} parent=0 // pred_fallthru
    _
  %v4 = vld [vmem:[%s0] ss:$0 sm:$0xff]
  %5 = vst [vmem:[%s1] sm:$0xff] %v4
  %s6 = scalar_lea.vmem %s1, 8
  %7 = vst [vmem:[%s6] sm:$0xff] %v4

// kernel: tile.40
$region0: #{tile.40}
  %s0 = inlined_call_operand.vmem [shape: f32[15,8], index: 0, kind: input, shape index: {}]
  %s1 = inlined_call_operand.vmem [shape: f32[1,120], index: 1, kind: output, shape index: {}]
  $region1: #{tile.40} parent=0
    #allocation0 [shape = 'u8[4096]{0}', space=vmem, size = 0x1000, scoped, tag = 'scoped mem for output reshape']
    %v2 = vld [vmem:[%s0] sm:$0x1]
    %vm3 = vcmask 64512
    %4 = vst.msk [vmem:[#allocation0] sm:$0x1] %vm3, %v2
    %s5 = scalar_lea.vmem %s0, 14
    %v6 = vld [vmem:[%s5] sm:$0x1]
    %7 = vrot.lane.b32.xlu0 %v6, 112
    %v8 = vpop.permute.xlu0 %7
    %vm9 = vcmask 982912
    %10 = vst.msk [vmem:[#allocation0] sm:$0x1] %vm9, %v8
    %s11 = scalar_lea.vmem %s0, 13
    %v12 = vld [vmem:[%s11] sm:$0x1]
    %13 = vrot.lane.b32.xlu0 %v12, 104
    %v14 = vpop.permute.xlu0 %13
    %vm15 = vcmask 917312
    %16 = vst.msk [vmem:[#allocation0] sm:$0x1] %vm15, %v14
    %s17 = scalar_lea.vmem %s0, 12
    %v18 = vld [vmem:[%s17] sm:$0x1]
    %19 = vrot.lane.b32.xlu0 %v18, 96
    %v20 = vpop.permute.xlu0 %19
    %vm21 = vcmask 851712
    %22 = vst.msk [vmem:[#allocation0] sm:$0x1] %vm21, %v20
    %s23 = scalar_lea.vmem %s0, 11
    %v24 = vld [vmem:[%s23] sm:$0x1]
    %25 = vrot.lane.b32.xlu0 %v24, 88
    %v26 = vpop.permute.xlu0 %25
    %vm27 = vcmask 786112
    %28 = vst.msk [vmem:[#allocation0] sm:$0x1] %vm27, %v26
    %s29 = scalar_lea.vmem %s0, 10
    %v30 = vld [vmem:[%s29] sm:$0x1]
    %31 = vrot.lane.b32.xlu0 %v30, 80
    %v32 = vpop.permute.xlu0 %31
    %vm33 = vcmask 720512
    %34 = vst.msk [vmem:[#allocation0] sm:$0x1] %vm33, %v32
    %s35 = scalar_lea.vmem %s0, 9
    %v36 = vld [vmem:[%s35] sm:$0x1]
    %37 = vrot.lane.b32.xlu0 %v36, 72
    %v38 = vpop.permute.xlu0 %37
    %vm39 = vcmask 654912
    %40 = vst.msk [vmem:[#allocation0] sm:$0x1] %vm39, %v38
    %s41 = scalar_lea.vmem %s0, 8
    %v42 = vld [vmem:[%s41] sm:$0x1]
    %43 = vrot.lane.b32.xlu0 %v42, 64
    %v44 = vpop.permute.xlu0 %43
    %vm45 = vcmask 589312
    %46 = vst.msk [vmem:[#allocation0] sm:$0x1] %vm45, %v44
    %s47 = scalar_lea.vmem %s0, 7
    %v48 = vld [vmem:[%s47] sm:$0x1]
    %49 = vrot.lane.b32.xlu0 %v48, 56
    %v50 = vpop.permute.xlu0 %49
    %vm51 = vcmask 523712
    %52 = vst.msk [vmem:[#allocation0] sm:$0x1] %vm51, %v50
    %s53 = scalar_lea.vmem %s0, 6
    %v54 = vld [vmem:[%s53] sm:$0x1]
    %55 = vrot.lane.b32.xlu0 %v54, 48
    %v56 = vpop.permute.xlu0 %55
    %vm57 = vcmask 458112
    %58 = vst.msk [vmem:[#allocation0] sm:$0x1] %vm57, %v56
    %s59 = scalar_lea.vmem %s0, 5
    %v60 = vld [vmem:[%s59] sm:$0x1]
    %61 = vrot.lane.b32.xlu0 %v60, 40
    %v62 = vpop.permute.xlu0 %61
    %vm63 = vcmask 392512
    %64 = vst.msk [vmem:[#allocation0] sm:$0x1] %vm63, %v62
    %s65 = scalar_lea.vmem %s0, 4
    %v66 = vld [vmem:[%s65] sm:$0x1]
    %67 = vrot.lane.b32.xlu0 %v66, 32
    %v68 = vpop.permute.xlu0 %67
    %vm69 = vcmask 326912
    %70 = vst.msk [vmem:[#allocation0] sm:$0x1] %vm69, %v68
    %s71 = scalar_lea.vmem %s0, 3
    %v72 = vld [vmem:[%s71] sm:$0x1]
    %73 = vrot.lane.b32.xlu0 %v72, 24
    %v74 = vpop.permute.xlu0 %73
    %vm75 = vcmask 261312
    %76 = vst.msk [vmem:[#allocation0] sm:$0x1] %vm75, %v74
    %s77 = scalar_lea.vmem %s0, 2
    %v78 = vld [vmem:[%s77] sm:$0x1]
    %79 = vrot.lane.b32.xlu0 %v78, 16
    %v80 = vpop.permute.xlu0 %79
    %vm81 = vcmask 195712
    %82 = vst.msk [vmem:[#allocation0] sm:$0x1] %vm81, %v80
    %s83 = scalar_lea.vmem %s0, 1
    %v84 = vld [vmem:[%s83] sm:$0x1]
    %85 = vrot.lane.b32.xlu0 %v84, 8
    %v86 = vpop.permute.xlu0 %85
    %vm87 = vcmask 130112
    %88 = vst.msk [vmem:[#allocation0] sm:$0x1] %vm87, %v86
    %s90 = sshll.u32 1, 1
    %s91 = ssub.s32 %s90, 1
    %v93 = vld [vmem:[#allocation0] sm:%s91]
    %s94 = sshll.u32 1, 1
    %s95 = ssub.s32 %s94, 1
    %96 = vst [vmem:[%s1] sm:%s95] %v93

// kernel: tile.44
$region0: #{tile.44}
  #allocation0 [shape = 's32[1]{0}', space=sflag, size = 0x4, scoped, tag = 'scoped memory for tile.44']
  %s0 = inlined_call_operand.vmem [shape: f32[16], index: 0, kind: input, shape index: {}]
  %s1 = inlined_call_operand.vmem [shape: f32[6,16], index: 1, kind: output, shape index: {}]
  // Predicated region
  $region2: #{tile.44} parent=0 // pred_check
    _
  $region3: #{tile.44} parent=0 // pred_check_branch
    %3 = sbr.rel (0) target = $region5
  $region4: #{tile.44} parent=0 // pred_region
    _
  $region5: #{tile.44} parent=0 // pred_fallthru
    _
  %v4 = vld [vmem:[%s0] ss:$0 sm:$0xff]
  %5 = vst [vmem:[%s1] sm:$0xff] %v4

// kernel: tile.45
$region0: #{tile.45}
  %s0 = inlined_call_operand.vmem [shape: f32[6,16], index: 0, kind: input, shape index: {}]
  %s1 = inlined_call_operand.vmem [shape: f32[1,96], index: 1, kind: output, shape index: {}]
  $region1: #{tile.45} parent=0
    #allocation0 [shape = 'u8[4096]{0}', space=vmem, size = 0x1000, scoped, tag = 'scoped mem for output reshape']
    %v2 = vld [vmem:[%s0] sm:$0x1]
    %vm3 = vcmask 130048
    %4 = vst.msk [vmem:[#allocation0] sm:$0x1] %vm3, %v2
    %s5 = scalar_lea.vmem %s0, 5
    %v6 = vld [vmem:[%s5] sm:$0x1]
    %7 = vrot.lane.b32.xlu0 %v6, 80
    %v8 = vpop.permute.xlu0 %7
    %vm9 = vcmask 786048
    %10 = vst.msk [vmem:[#allocation0] sm:$0x1] %vm9, %v8
    %s11 = scalar_lea.vmem %s0, 4
    %v12 = vld [vmem:[%s11] sm:$0x1]
    %13 = vrot.lane.b32.xlu0 %v12, 64
    %v14 = vpop.permute.xlu0 %13
    %vm15 = vcmask 654848
    %16 = vst.msk [vmem:[#allocation0] sm:$0x1] %vm15, %v14
    %s17 = scalar_lea.vmem %s0, 3
    %v18 = vld [vmem:[%s17] sm:$0x1]
    %19 = vrot.lane.b32.xlu0 %v18, 48
    %v20 = vpop.permute.xlu0 %19
    %vm21 = vcmask 523648
    %22 = vst.msk [vmem:[#allocation0] sm:$0x1] %vm21, %v20
    %s23 = scalar_lea.vmem %s0, 2
    %v24 = vld [vmem:[%s23] sm:$0x1]
    %25 = vrot.lane.b32.xlu0 %v24, 32
    %v26 = vpop.permute.xlu0 %25
    %vm27 = vcmask 392448
    %28 = vst.msk [vmem:[#allocation0] sm:$0x1] %vm27, %v26
    %s29 = scalar_lea.vmem %s0, 1
    %v30 = vld [vmem:[%s29] sm:$0x1]
    %31 = vrot.lane.b32.xlu0 %v30, 16
    %v32 = vpop.permute.xlu0 %31
    %vm33 = vcmask 261248
    %34 = vst.msk [vmem:[#allocation0] sm:$0x1] %vm33, %v32
    %s36 = sshll.u32 1, 1
    %s37 = ssub.s32 %s36, 1
    %v39 = vld [vmem:[#allocation0] sm:%s37]
    %s40 = sshll.u32 1, 1
    %s41 = ssub.s32 %s40, 1
    %42 = vst [vmem:[%s1] sm:%s41] %v39

// kernel: tile.59
$region0: #{tile.59}
  #allocation0 [shape = 's32[1]{0}', space=sflag, size = 0x4, scoped, tag = 'scoped memory for tile.59']
  %s0 = inlined_call_operand.vmem [shape: f32[32], index: 0, kind: input, shape index: {}]
  %s1 = inlined_call_operand.vmem [shape: f32[2,32], index: 1, kind: output, shape index: {}]
  // Predicated region
  $region2: #{tile.59} parent=0 // pred_check
    _
  $region3: #{tile.59} parent=0 // pred_check_branch
    %3 = sbr.rel (0) target = $region5
  $region4: #{tile.59} parent=0 // pred_region
    _
  $region5: #{tile.59} parent=0 // pred_fallthru
    _
  %v4 = vld [vmem:[%s0] ss:$0 sm:$0xff]
  %5 = vst [vmem:[%s1] sm:$0x3] %v4

// kernel: tile.60
$region0: #{tile.60}
  %s0 = inlined_call_operand.vmem [shape: f32[2,32], index: 0, kind: input, shape index: {}]
  %s1 = inlined_call_operand.vmem [shape: f32[1,64], index: 1, kind: output, shape index: {}]
  $region1: #{tile.60} parent=0
    #allocation0 [shape = 'u8[4096]{0}', space=vmem, size = 0x1000, scoped, tag = 'scoped mem for output reshape']
    #allocation1 [shape = 'u8[4096]{0}', space=vmem, size = 0x1000, scoped, tag = 'scoped mem for input reshape']
    %s3 = sshll.u32 1, 2
    %s4 = ssub.s32 %s3, 1
    %v5 = vld [vmem:[%s0] sm:%s4]
    %6 = vst [vmem:[#allocation1] sm:%s4] %v5
    %v7 = vld [vmem:[#allocation1] sm:$0x1]
    %vm8 = vcmask 261120
    %9 = vst.msk [vmem:[#allocation0] sm:$0x1] %vm8, %v7
    %s10 = scalar_lea.vmem [#allocation1], 1
    %v11 = vld [vmem:[%s10] sm:$0x1]
    %12 = vrot.lane.b32.xlu0 %v11, 32
    %v13 = vpop.permute.xlu0 %12
    %vm14 = vcmask 523520
    %15 = vst.msk [vmem:[#allocation0] sm:$0x1] %vm14, %v13
    %s17 = sshll.u32 1, 1
    %s18 = ssub.s32 %s17, 1
    %v20 = vld [vmem:[#allocation0] sm:%s18]
    %s21 = sshll.u32 1, 1
    %s22 = ssub.s32 %s21, 1
    %23 = vst [vmem:[%s1] sm:%s22] %v20

// kernel: discriminator_forward.1
$region0: #{discriminator_forward.1}
  #allocation0 [shape = 'u32[]', space=smem, size = 0x4, offset = 0x4, fixed_abs, tag = 'smem constant byte address 0x4 - core index']
  #allocation1 [shape = 'u32[144,128]{1,0:T(1,128)}', space=vmem, size = 0x12000, scoped, tag = 'internal scratch']
  #allocation2 [shape = 'f32[1,1]{1,0:T(1,128)S(1)}', space=vmem, size = 0x200, scoped, tag = 'scoped memory for discriminator_forward.1']
  %s0 = inlined_call_operand.vmem [shape: f32[64,96], index: 0, kind: input, shape index: {}]
  %s1 = inlined_call_operand.vmem [shape: bf16[4,30,64], index: 1, kind: input, shape index: {}]
  %s2 = inlined_call_operand.vmem [shape: bf16[384,120], index: 2, kind: input, shape index: {}]
  %s3 = inlined_call_operand.vmem [shape: f32[1,120], index: 3, kind: input, shape index: {}]
  %s4 = inlined_call_operand.vmem [shape: bf16[4,12,30], index: 4, kind: input, shape index: {}]
  %s5 = inlined_call_operand.vmem [shape: bf16[480,96], index: 5, kind: input, shape index: {}]
  %s6 = inlined_call_operand.vmem [shape: f32[1,96], index: 6, kind: input, shape index: {}]
  %s7 = inlined_call_operand.vmem [shape: f32[96,96], index: 7, kind: input, shape index: {}]
  %s8 = inlined_call_operand.vmem [shape: f32[1,96], index: 8, kind: input, shape index: {}]
  %s9 = inlined_call_operand.vmem [shape: f32[1,96], index: 9, kind: input, shape index: {}]
  %s10 = inlined_call_operand.vmem [shape: bf16[4,4,12], index: 10, kind: input, shape index: {}]
  %s11 = inlined_call_operand.vmem [shape: bf16[384,64], index: 11, kind: input, shape index: {}]
  %s12 = inlined_call_operand.vmem [shape: f32[1,64], index: 12, kind: input, shape index: {}]
  %s13 = inlined_call_operand.vmem [shape: f32[64,64], index: 13, kind: input, shape index: {}]
  %s14 = inlined_call_operand.vmem [shape: f32[1,64], index: 14, kind: input, shape index: {}]
  %s15 = inlined_call_operand.vmem [shape: f32[1,64], index: 15, kind: input, shape index: {}]
  %s16 = inlined_call_operand.vmem [shape: bf16[2,2,4], index: 16, kind: input, shape index: {}]
  %s17 = inlined_call_operand.vmem [shape: bf16[128,1], index: 17, kind: input, shape index: {}]
  %s18 = inlined_call_operand.<no memory space> [shape: f32[1,1], index: 18, kind: input, shape index: {}]
  %s19 = inlined_call_operand.vmem [shape: f32[2,1], index: 19, kind: output, shape index: {}]
  %s20 = sld [smem:[#allocation0]]
  $region86: #{discriminator_forward.1} parent=0
    _
  %s22 = ssub.s32 1, %s20
  %s23 = scalar_select 0, %s22, %s20
  %v24 = vstv %s18
  %25 = vst [vmem:[#allocation2] sm:$0x1] %v24
  // Predicated region
  $region2: #{discriminator_forward.1} parent=0 // pred_check
    _
  $region3: #{discriminator_forward.1} parent=0 // pred_check_branch
    %27 = sbr.rel (0) target = $region5
  $region4: #{discriminator_forward.1} parent=0 // pred_region
    _
  $region5: #{discriminator_forward.1} parent=0 // pred_fallthru
    _
  // Predicated region
  $region6: #{discriminator_forward.1} parent=0 // pred_check
    _
  $region7: #{discriminator_forward.1} parent=0 // pred_check_branch
    %29 = sbr.rel (0) target = $region9
  $region8: #{discriminator_forward.1} parent=0 // pred_region
    _
  $region9: #{discriminator_forward.1} parent=0 // pred_fallthru
    _
  // Predicated region
  $region10: #{discriminator_forward.1} parent=0 // pred_check
    _
  $region11: #{discriminator_forward.1} parent=0 // pred_check_branch
    %31 = sbr.rel (0) target = $region13
  $region12: #{discriminator_forward.1} parent=0 // pred_region
    _
  $region13: #{discriminator_forward.1} parent=0 // pred_fallthru
    _
  // Predicated region
  $region14: #{discriminator_forward.1} parent=0 // pred_check
    _
  $region15: #{discriminator_forward.1} parent=0 // pred_check_branch
    %33 = sbr.rel (0) target = $region17
  $region16: #{discriminator_forward.1} parent=0 // pred_region
    _
  $region17: #{discriminator_forward.1} parent=0 // pred_fallthru
    _
  // Predicated region
  $region18: #{discriminator_forward.1} parent=0 // pred_check
    _
  $region19: #{discriminator_forward.1} parent=0 // pred_check_branch
    %35 = sbr.rel (0) target = $region21
  $region20: #{discriminator_forward.1} parent=0 // pred_region
    _
  $region21: #{discriminator_forward.1} parent=0 // pred_fallthru
    _
  // Predicated region
  $region22: #{discriminator_forward.1} parent=0 // pred_check
    _
  $region23: #{discriminator_forward.1} parent=0 // pred_check_branch
    %37 = sbr.rel (0) target = $region25
  $region24: #{discriminator_forward.1} parent=0 // pred_region
    _
  $region25: #{discriminator_forward.1} parent=0 // pred_fallthru
    _
  // Predicated region
  $region26: #{discriminator_forward.1} parent=0 // pred_check
    _
  $region27: #{discriminator_forward.1} parent=0 // pred_check_branch
    %39 = sbr.rel (0) target = $region29
  $region28: #{discriminator_forward.1} parent=0 // pred_region
    _
  $region29: #{discriminator_forward.1} parent=0 // pred_fallthru
    _
  // Predicated region
  $region30: #{discriminator_forward.1} parent=0 // pred_check
    _
  $region31: #{discriminator_forward.1} parent=0 // pred_check_branch
    %41 = sbr.rel (0) target = $region33
  $region32: #{discriminator_forward.1} parent=0 // pred_region
    _
  $region33: #{discriminator_forward.1} parent=0 // pred_fallthru
    _
  // Predicated region
  $region34: #{discriminator_forward.1} parent=0 // pred_check
    _
  $region35: #{discriminator_forward.1} parent=0 // pred_check_branch
    %43 = sbr.rel (0) target = $region37
  $region36: #{discriminator_forward.1} parent=0 // pred_region
    _
  $region37: #{discriminator_forward.1} parent=0 // pred_fallthru
    _
  // Predicated region
  $region38: #{discriminator_forward.1} parent=0 // pred_check
    _
  $region39: #{discriminator_forward.1} parent=0 // pred_check_branch
    %45 = sbr.rel (0) target = $region41
  $region40: #{discriminator_forward.1} parent=0 // pred_region
    _
  $region41: #{discriminator_forward.1} parent=0 // pred_fallthru
    _
  // Predicated region
  $region42: #{discriminator_forward.1} parent=0 // pred_check
    _
  $region43: #{discriminator_forward.1} parent=0 // pred_check_branch
    %47 = sbr.rel (0) target = $region45
  $region44: #{discriminator_forward.1} parent=0 // pred_region
    _
  $region45: #{discriminator_forward.1} parent=0 // pred_fallthru
    _
  // Predicated region
  $region46: #{discriminator_forward.1} parent=0 // pred_check
    _
  $region47: #{discriminator_forward.1} parent=0 // pred_check_branch
    %49 = sbr.rel (0) target = $region49
  $region48: #{discriminator_forward.1} parent=0 // pred_region
    _
  $region49: #{discriminator_forward.1} parent=0 // pred_fallthru
    _
  // Predicated region
  $region50: #{discriminator_forward.1} parent=0 // pred_check
    _
  $region51: #{discriminator_forward.1} parent=0 // pred_check_branch
    %51 = sbr.rel (0) target = $region53
  $region52: #{discriminator_forward.1} parent=0 // pred_region
    _
  $region53: #{discriminator_forward.1} parent=0 // pred_fallthru
    _
  // Predicated region
  $region54: #{discriminator_forward.1} parent=0 // pred_check
    _
  $region55: #{discriminator_forward.1} parent=0 // pred_check_branch
    %53 = sbr.rel (0) target = $region57
  $region56: #{discriminator_forward.1} parent=0 // pred_region
    _
  $region57: #{discriminator_forward.1} parent=0 // pred_fallthru
    _
  // Predicated region
  $region58: #{discriminator_forward.1} parent=0 // pred_check
    _
  $region59: #{discriminator_forward.1} parent=0 // pred_check_branch
    %55 = sbr.rel (0) target = $region61
  $region60: #{discriminator_forward.1} parent=0 // pred_region
    _
  $region61: #{discriminator_forward.1} parent=0 // pred_fallthru
    _
  // Predicated region
  $region62: #{discriminator_forward.1} parent=0 // pred_check
    _
  $region63: #{discriminator_forward.1} parent=0 // pred_check_branch
    %57 = sbr.rel (0) target = $region65
  $region64: #{discriminator_forward.1} parent=0 // pred_region
    _
  $region65: #{discriminator_forward.1} parent=0 // pred_fallthru
    _
  // Predicated region
  $region66: #{discriminator_forward.1} parent=0 // pred_check
    _
  $region67: #{discriminator_forward.1} parent=0 // pred_check_branch
    %59 = sbr.rel (0) target = $region69
  $region68: #{discriminator_forward.1} parent=0 // pred_region
    _
  $region69: #{discriminator_forward.1} parent=0 // pred_fallthru
    _
  // Predicated region
  $region70: #{discriminator_forward.1} parent=0 // pred_check
    _
  $region71: #{discriminator_forward.1} parent=0 // pred_check_branch
    %61 = sbr.rel (0) target = $region73
  $region72: #{discriminator_forward.1} parent=0 // pred_region
    _
  $region73: #{discriminator_forward.1} parent=0 // pred_fallthru
    _
  // Predicated region
  $region74: #{discriminator_forward.1} parent=0 // pred_check
    _
  $region75: #{discriminator_forward.1} parent=0 // pred_check_branch
    %63 = sbr.rel (0) target = $region77
  $region76: #{discriminator_forward.1} parent=0 // pred_region
    _
  $region77: #{discriminator_forward.1} parent=0 // pred_fallthru
    _
  %v65 = vld [vmem:[%s0] sm:$0xff]
  %v66 = vld [vmem:[%s0 + $0x8] sm:$0xff]
  %v67 = vld [vmem:[%s0 + $0x10] sm:$0xff]
  %v68 = vld [vmem:[%s0 + $0x18] sm:$0xff]
  %v69 = vld [vmem:[%s0 + $0x20] sm:$0xff]
  %v70 = vld [vmem:[%s0 + $0x28] sm:$0xff]
  %v71 = vld [vmem:[%s0 + $0x30] sm:$0xff]
  %v72 = vld [vmem:[%s0 + $0x38] sm:$0xff]
  %v73 = vpack.c.bf16 %v66, %v65
  %v74 = vpack.c.bf16 %v68, %v67
  %v75 = vpack.c.bf16 %v70, %v69
  %v76 = vpack.c.bf16 %v72, %v71
  %v77 = vld [vmem:[%s1] sm:$0xf]
  %v78 = vld [vmem:[%s1 + $0x4] sm:$0xf]
  %v79 = vld [vmem:[%s1 + $0x8] sm:$0xf]
  %v80 = vld [vmem:[%s1 + $0xc] sm:$0x7]
  %v85 = vunpack.c.l.b16 %v77
  %v86 = vunpack.c.l.b16 %v78
  %v87 = vunpack.c.l.b16 %v79
  %v88 = vunpack.c.l.b16 %v80
  %v89 = vpack.c.b16 %v86, %v85
  %v90 = vpack.c.b16 %v88, %v87
  %vm91 = vcmask 523264
  %v93 = vsel %vm91, %v89, 0
  %v96 = vsel %vm91, %v90, 0
  %98 = vmatprep.subr.bf16.mxu0 0
  %99 = vmatpush1.bf16.msra.mxu0 0
  %100 = vmatprep.subr.bf16.mxu0 0
  %101 = vmatpush1.bf16.msra.mxu0 0
  %102 = vmatprep.subr.bf16.mxu0 0
  %103 = vmatpush1.bf16.msra.mxu0 0
  %104 = vmatprep.subr.bf16.mxu0 0
  %105 = vmatpush1.bf16.msra.mxu0 0
  %106 = vmatprep.subr.bf16.mxu0 0
  %107 = vmatpush1.bf16.msra.mxu0 %v76
  %108 = vmatprep.subr.bf16.mxu0 0
  %109 = vmatpush1.bf16.msra.mxu0 %v75
  %110 = vmatprep.subr.bf16.mxu0 0
  %111 = vmatpush1.bf16.msra.mxu0 %v74
  %112 = vmatprep.subr.bf16.mxu0 0
  %113 = vmatpush1.bf16.msra.mxu0 %v73
  %114 = vmatprep.subr.bf16.mxu0 0
  %115 = vmatpush2.bf16.msra.mxu0 0
  %116 = vmatprep.subr.bf16.mxu0 0
  %117 = vmatpush2.bf16.msra.mxu0 0
  %118 = vmatprep.subr.bf16.mxu0 0
  %119 = vmatpush2.bf16.msra.mxu0 0
  %120 = vmatprep.subr.bf16.mxu0 0
  %121 = vmatpush2.bf16.msra.mxu0 0
  %122 = vmatprep.subr.bf16.mxu0 0
  %123 = vmatpush2.bf16.msra.mxu0 0
  %124 = vmatprep.subr.bf16.mxu0 0
  %125 = vmatpush2.bf16.msra.mxu0 0
  %126 = vmatprep.subr.bf16.mxu0 0
  %127 = vmatpush2.bf16.msra.mxu0 0
  %128 = vmatprep.subr.bf16.mxu0 0
  %129 = vmatpush2.bf16.msra.mxu0 0
  %130 = vmatprep.mubr.bf16.mxu0 0
  %131 = vmatmul.mubr.bf16.gmra.mxu0 %v93
  %v132 = vpop.f32.mrf.mxu0
  %v133 = vadd.f32 0.0, %v132
  %v134 = vpop.f32.mrf.mxu0
  %v135 = vpop.f32.mrf.mxu0
  %v136 = vadd.f32 0.0, %v135
  %v137 = vpop.f32.mrf.mxu0
  %138 = vmatprep.mubr.bf16.mxu0 0
  %139 = vmatmul.mubr.bf16.gmra.mxu0 %v96
  %v140 = vpop.f32.mrf.mxu0
  %v141 = vadd.f32 0.0, %v140
  %v142 = vpop.f32.mrf.mxu0
  %v143 = vpop.f32.mrf.mxu0
  %v144 = vadd.f32 0.0, %v143
  %v145 = vpop.f32.mrf.mxu0
  %146 = vdwg.mxu0
  %s147 = scalar_lea.vmem %s1, 16
  %v148 = vld [vmem:[%s147] sm:$0xf]
  %v149 = vld [vmem:[%s147 + $0x4] sm:$0xf]
  %v150 = vld [vmem:[%s147 + $0x8] sm:$0xf]
  %v151 = vld [vmem:[%s147 + $0xc] sm:$0x7]
  %v156 = vunpack.c.l.b16 %v148
  %v157 = vunpack.c.l.b16 %v149
  %v158 = vunpack.c.l.b16 %v150
  %v159 = vunpack.c.l.b16 %v151
  %v160 = vpack.c.b16 %v157, %v156
  %v161 = vpack.c.b16 %v159, %v158
  %v163 = vsel %vm91, %v160, 0
  %v166 = vsel %vm91, %v161, 0
  %168 = vmatprep.subr.bf16.mxu0 0
  %169 = vmatpush1.bf16.msra.mxu0 0
  %170 = vmatprep.subr.bf16.mxu0 0
  %171 = vmatpush1.bf16.msra.mxu0 0
  %172 = vmatprep.subr.bf16.mxu0 0
  %173 = vmatpush1.bf16.msra.mxu0 0
  %174 = vmatprep.subr.bf16.mxu0 0
  %175 = vmatpush1.bf16.msra.mxu0 0
  %176 = vmatprep.subr.bf16.mxu0 0
  %177 = vmatpush1.bf16.msra.mxu0 %v76
  %178 = vmatprep.subr.bf16.mxu0 0
  %179 = vmatpush1.bf16.msra.mxu0 %v75
  %180 = vmatprep.subr.bf16.mxu0 0
  %181 = vmatpush1.bf16.msra.mxu0 %v74
  %182 = vmatprep.subr.bf16.mxu0 0
  %183 = vmatpush1.bf16.msra.mxu0 %v73
  %184 = vmatprep.subr.bf16.mxu0 0
  %185 = vmatpush2.bf16.msra.mxu0 0
  %186 = vmatprep.subr.bf16.mxu0 0
  %187 = vmatpush2.bf16.msra.mxu0 0
  %188 = vmatprep.subr.bf16.mxu0 0
  %189 = vmatpush2.bf16.msra.mxu0 0
  %190 = vmatprep.subr.bf16.mxu0 0
  %191 = vmatpush2.bf16.msra.mxu0 0
  %192 = vmatprep.subr.bf16.mxu0 0
  %193 = vmatpush2.bf16.msra.mxu0 0
  %194 = vmatprep.subr.bf16.mxu0 0
  %195 = vmatpush2.bf16.msra.mxu0 0
  %196 = vmatprep.subr.bf16.mxu0 0
  %197 = vmatpush2.bf16.msra.mxu0 0
  %198 = vmatprep.subr.bf16.mxu0 0
  %199 = vmatpush2.bf16.msra.mxu0 0
  %200 = vmatprep.mubr.bf16.mxu0 0
  %201 = vmatmul.mubr.bf16.gmra.mxu0 %v163
  %v202 = vpop.f32.mrf.mxu0
  %v203 = vadd.f32 0.0, %v202
  %v204 = vpop.f32.mrf.mxu0
  %v205 = vpop.f32.mrf.mxu0
  %v206 = vadd.f32 0.0, %v205
  %v207 = vpop.f32.mrf.mxu0
  %208 = vmatprep.mubr.bf16.mxu0 0
  %209 = vmatmul.mubr.bf16.gmra.mxu0 %v166
  %v210 = vpop.f32.mrf.mxu0
  %v211 = vadd.f32 0.0, %v210
  %v212 = vpop.f32.mrf.mxu0
  %v213 = vpop.f32.mrf.mxu0
  %v214 = vadd.f32 0.0, %v213
  %v215 = vpop.f32.mrf.mxu0
  %216 = vdwg.mxu0
  %s217 = scalar_lea.vmem %s1, 32
  %v218 = vld [vmem:[%s217] sm:$0xf]
  %v219 = vld [vmem:[%s217 + $0x4] sm:$0xf]
  %v220 = vld [vmem:[%s217 + $0x8] sm:$0xf]
  %v221 = vld [vmem:[%s217 + $0xc] sm:$0x7]
  %v226 = vunpack.c.l.b16 %v218
  %v227 = vunpack.c.l.b16 %v219
  %v228 = vunpack.c.l.b16 %v220
  %v229 = vunpack.c.l.b16 %v221
  %v230 = vpack.c.b16 %v227, %v226
  %v231 = vpack.c.b16 %v229, %v228
  %v233 = vsel %vm91, %v230, 0
  %v236 = vsel %vm91, %v231, 0
  %238 = vmatprep.subr.bf16.mxu0 0
  %239 = vmatpush1.bf16.msra.mxu0 0
  %240 = vmatprep.subr.bf16.mxu0 0
  %241 = vmatpush1.bf16.msra.mxu0 0
  %242 = vmatprep.subr.bf16.mxu0 0
  %243 = vmatpush1.bf16.msra.mxu0 0
  %244 = vmatprep.subr.bf16.mxu0 0
  %245 = vmatpush1.bf16.msra.mxu0 0
  %246 = vmatprep.subr.bf16.mxu0 0
  %247 = vmatpush1.bf16.msra.mxu0 %v76
  %248 = vmatprep.subr.bf16.mxu0 0
  %249 = vmatpush1.bf16.msra.mxu0 %v75
  %250 = vmatprep.subr.bf16.mxu0 0
  %251 = vmatpush1.bf16.msra.mxu0 %v74
  %252 = vmatprep.subr.bf16.mxu0 0
  %253 = vmatpush1.bf16.msra.mxu0 %v73
  %254 = vmatprep.subr.bf16.mxu0 0
  %255 = vmatpush2.bf16.msra.mxu0 0
  %256 = vmatprep.subr.bf16.mxu0 0
  %257 = vmatpush2.bf16.msra.mxu0 0
  %258 = vmatprep.subr.bf16.mxu0 0
  %259 = vmatpush2.bf16.msra.mxu0 0
  %260 = vmatprep.subr.bf16.mxu0 0
  %261 = vmatpush2.bf16.msra.mxu0 0
  %262 = vmatprep.subr.bf16.mxu0 0
  %263 = vmatpush2.bf16.msra.mxu0 0
  %264 = vmatprep.subr.bf16.mxu0 0
  %265 = vmatpush2.bf16.msra.mxu0 0
  %266 = vmatprep.subr.bf16.mxu0 0
  %267 = vmatpush2.bf16.msra.mxu0 0
  %268 = vmatprep.subr.bf16.mxu0 0
  %269 = vmatpush2.bf16.msra.mxu0 0
  %270 = vmatprep.mubr.bf16.mxu0 0
  %271 = vmatmul.mubr.bf16.gmra.mxu0 %v233
  %v272 = vpop.f32.mrf.mxu0
  %v273 = vadd.f32 0.0, %v272
  %v274 = vpop.f32.mrf.mxu0
  %v275 = vpop.f32.mrf.mxu0
  %v276 = vadd.f32 0.0, %v275
  %v277 = vpop.f32.mrf.mxu0
  %278 = vmatprep.mubr.bf16.mxu0 0
  %279 = vmatmul.mubr.bf16.gmra.mxu0 %v236
  %v280 = vpop.f32.mrf.mxu0
  %v281 = vadd.f32 0.0, %v280
  %v282 = vpop.f32.mrf.mxu0
  %v283 = vpop.f32.mrf.mxu0
  %v284 = vadd.f32 0.0, %v283
  %v285 = vpop.f32.mrf.mxu0
  %286 = vdwg.mxu0
  %s287 = scalar_lea.vmem %s1, 48
  %v288 = vld [vmem:[%s287] sm:$0xf]
  %v289 = vld [vmem:[%s287 + $0x4] sm:$0xf]
  %v290 = vld [vmem:[%s287 + $0x8] sm:$0xf]
  %v291 = vld [vmem:[%s287 + $0xc] sm:$0x7]
  %v296 = vunpack.c.l.b16 %v288
  %v297 = vunpack.c.l.b16 %v289
  %v298 = vunpack.c.l.b16 %v290
  %v299 = vunpack.c.l.b16 %v291
  %v300 = vpack.c.b16 %v297, %v296
  %v301 = vpack.c.b16 %v299, %v298
  %v303 = vsel %vm91, %v300, 0
  %v306 = vsel %vm91, %v301, 0
  %308 = vmatprep.subr.bf16.mxu0 0
  %309 = vmatpush1.bf16.msra.mxu0 0
  %310 = vmatprep.subr.bf16.mxu0 0
  %311 = vmatpush1.bf16.msra.mxu0 0
  %312 = vmatprep.subr.bf16.mxu0 0
  %313 = vmatpush1.bf16.msra.mxu0 0
  %314 = vmatprep.subr.bf16.mxu0 0
  %315 = vmatpush1.bf16.msra.mxu0 0
  %316 = vmatprep.subr.bf16.mxu0 0
  %317 = vmatpush1.bf16.msra.mxu0 %v76
  %318 = vmatprep.subr.bf16.mxu0 0
  %319 = vmatpush1.bf16.msra.mxu0 %v75
  %320 = vmatprep.subr.bf16.mxu0 0
  %321 = vmatpush1.bf16.msra.mxu0 %v74
  %322 = vmatprep.subr.bf16.mxu0 0
  %323 = vmatpush1.bf16.msra.mxu0 %v73
  %324 = vmatprep.subr.bf16.mxu0 0
  %325 = vmatpush2.bf16.msra.mxu0 0
  %326 = vmatprep.subr.bf16.mxu0 0
  %327 = vmatpush2.bf16.msra.mxu0 0
  %328 = vmatprep.subr.bf16.mxu0 0
  %329 = vmatpush2.bf16.msra.mxu0 0
  %330 = vmatprep.subr.bf16.mxu0 0
  %331 = vmatpush2.bf16.msra.mxu0 0
  %332 = vmatprep.subr.bf16.mxu0 0
  %333 = vmatpush2.bf16.msra.mxu0 0
  %334 = vmatprep.subr.bf16.mxu0 0
  %335 = vmatpush2.bf16.msra.mxu0 0
  %336 = vmatprep.subr.bf16.mxu0 0
  %337 = vmatpush2.bf16.msra.mxu0 0
  %338 = vmatprep.subr.bf16.mxu0 0
  %339 = vmatpush2.bf16.msra.mxu0 0
  %340 = vmatprep.mubr.bf16.mxu0 0
  %341 = vmatmul.mubr.bf16.gmra.mxu0 %v303
  %v342 = vpop.f32.mrf.mxu0
  %v343 = vadd.f32 0.0, %v342
  %v344 = vpop.f32.mrf.mxu0
  %v345 = vpop.f32.mrf.mxu0
  %v346 = vadd.f32 0.0, %v345
  %v347 = vpop.f32.mrf.mxu0
  %348 = vmatprep.mubr.bf16.mxu0 0
  %349 = vmatmul.mubr.bf16.gmra.mxu0 %v306
  %v350 = vpop.f32.mrf.mxu0
  %v351 = vadd.f32 0.0, %v350
  %v352 = vpop.f32.mrf.mxu0
  %v353 = vpop.f32.mrf.mxu0
  %v354 = vadd.f32 0.0, %v353
  %v355 = vpop.f32.mrf.mxu0
  %356 = vdwg.mxu0
  %361 = vrot.lane.b32.xlu0 %v203, 96
  %v362 = vpop.permute.xlu0 %361
  %363 = vrot.lane.b32.xlu0 %v206, 96
  %v364 = vpop.permute.xlu0 %363
  %365 = vrot.lane.b32.xlu0 %v211, 96
  %v366 = vpop.permute.xlu0 %365
  %367 = vrot.lane.b32.xlu0 %v214, 96
  %v368 = vpop.permute.xlu0 %367
  %377 = vrot.lane.b32.xlu0 %v273, 64
  %v378 = vpop.permute.xlu0 %377
  %379 = vrot.lane.b32.xlu0 %v276, 64
  %v380 = vpop.permute.xlu0 %379
  %381 = vrot.lane.b32.xlu0 %v281, 64
  %v382 = vpop.permute.xlu0 %381
  %383 = vrot.lane.b32.xlu0 %v284, 64
  %v384 = vpop.permute.xlu0 %383
  %393 = vrot.lane.b32.xlu0 %v343, 32
  %v394 = vpop.permute.xlu0 %393
  %395 = vrot.lane.b32.xlu0 %v346, 32
  %v396 = vpop.permute.xlu0 %395
  %397 = vrot.lane.b32.xlu0 %v351, 32
  %v398 = vpop.permute.xlu0 %397
  %399 = vrot.lane.b32.xlu0 %v354, 32
  %v400 = vpop.permute.xlu0 %399
  %vm405 = vcmask 785408
  %v406 = vsel %vm405, %v133, %v362
  %v407 = vsel %vm405, %v136, %v364
  %v408 = vsel %vm405, %v141, %v366
  %v409 = vsel %vm405, %v144, %v368
  %v410 = vsel %vm91, %v362, %v378
  %v411 = vsel %vm91, %v364, %v380
  %v412 = vsel %vm91, %v366, %v382
  %v413 = vsel %vm91, %v368, %v384
  %vm414 = vcmask 261120
  %v415 = vsel %vm414, %v378, %v394
  %v416 = vsel %vm414, %v380, %v396
  %v417 = vsel %vm414, %v382, %v398
  %v418 = vsel %vm414, %v384, %v400
  %v419 = vpack.c.bf16 %v407, %v406
  %v420 = vpack.c.bf16 %v411, %v410
  %v421 = vpack.c.bf16 %v416, %v415
  %v422 = vpack.c.bf16 %v409, %v408
  %v423 = vpack.c.bf16 %v413, %v412
  %v424 = vpack.c.bf16 %v418, %v417
  %v425 = vld [vmem:[%s2] sm:$0xf]
  %v426 = vld [vmem:[%s2 + $0x4] sm:$0xf]
  %v427 = vld [vmem:[%s2 + $0x8] sm:$0xf]
  %v428 = vld [vmem:[%s2 + $0xc] sm:$0xf]
  %v429 = vld [vmem:[%s2 + $0x10] sm:$0xf]
  %v430 = vld [vmem:[%s2 + $0x14] sm:$0xf]
  %v431 = vld [vmem:[%s2 + $0x18] sm:$0xf]
  %v432 = vld [vmem:[%s2 + $0x1c] sm:$0xf]
  %v433 = vld [vmem:[%s2 + $0x20] sm:$0xf]
  %v434 = vld [vmem:[%s2 + $0x24] sm:$0xf]
  %v435 = vld [vmem:[%s2 + $0x28] sm:$0xf]
  %v436 = vld [vmem:[%s2 + $0x2c] sm:$0xf]
  %v437 = vld [vmem:[%s2 + $0x30] sm:$0xf]
  %v438 = vld [vmem:[%s2 + $0x34] sm:$0xf]
  %v439 = vld [vmem:[%s2 + $0x38] sm:$0xf]
  %v440 = vld [vmem:[%s2 + $0x3c] sm:$0xf]
  %v441 = vld [vmem:[%s2 + $0x40] sm:$0xf]
  %v442 = vld [vmem:[%s2 + $0x44] sm:$0xf]
  %v443 = vld [vmem:[%s2 + $0x48] sm:$0xf]
  %v444 = vld [vmem:[%s2 + $0x4c] sm:$0xf]
  %v445 = vld [vmem:[%s2 + $0x50] sm:$0xf]
  %v446 = vld [vmem:[%s2 + $0x54] sm:$0xf]
  %v447 = vld [vmem:[%s2 + $0x58] sm:$0xf]
  %v448 = vld [vmem:[%s2 + $0x5c] sm:$0xf]
  %v449 = vld [vmem:[%s2 + $0x60] sm:$0xf]
  %v450 = vld [vmem:[%s2 + $0x64] sm:$0xf]
  %v451 = vld [vmem:[%s2 + $0x68] sm:$0xf]
  %v452 = vld [vmem:[%s2 + $0x6c] sm:$0xf]
  %v453 = vld [vmem:[%s2 + $0x70] sm:$0xf]
  %v454 = vld [vmem:[%s2 + $0x74] sm:$0xf]
  %v455 = vld [vmem:[%s2 + $0x78] sm:$0xf]
  %v456 = vld [vmem:[%s2 + $0x7c] sm:$0xf]
  %v457 = vld [vmem:[%s2 + $0x80] sm:$0xf]
  %v458 = vld [vmem:[%s2 + $0x84] sm:$0xf]
  %v459 = vld [vmem:[%s2 + $0x88] sm:$0xf]
  %v460 = vld [vmem:[%s2 + $0x8c] sm:$0xf]
  %v461 = vld [vmem:[%s2 + $0x90] sm:$0xf]
  %v462 = vld [vmem:[%s2 + $0x94] sm:$0xf]
  %v463 = vld [vmem:[%s2 + $0x98] sm:$0xf]
  %v464 = vld [vmem:[%s2 + $0x9c] sm:$0xf]
  %v465 = vld [vmem:[%s2 + $0xa0] sm:$0xf]
  %v466 = vld [vmem:[%s2 + $0xa4] sm:$0xf]
  %v467 = vld [vmem:[%s2 + $0xa8] sm:$0xf]
  %v468 = vld [vmem:[%s2 + $0xac] sm:$0xf]
  %v469 = vld [vmem:[%s2 + $0xb0] sm:$0xf]
  %v470 = vld [vmem:[%s2 + $0xb4] sm:$0xf]
  %v471 = vld [vmem:[%s2 + $0xb8] sm:$0xf]
  %v472 = vld [vmem:[%s2 + $0xbc] sm:$0xf]
  %v473 = vld [vmem:[%s3] sm:$0x1]
  %v475 = vlaneseq
  %v476 = vshrl.u32 %v475, 7
  %v477 = vsub.s32 0, %v476
  %v478 = vrot.slane %v473, %v477
  %v528 = vunpack.c.l.b16 %v425
  %v529 = vunpack.c.l.b16 %v426
  %v530 = vunpack.c.l.b16 %v427
  %v531 = vunpack.c.l.b16 %v428
  %v532 = vunpack.c.l.b16 %v429
  %v533 = vunpack.c.l.b16 %v430
  %v534 = vunpack.c.l.b16 %v431
  %v535 = vunpack.c.l.b16 %v432
  %v536 = vunpack.c.l.b16 %v433
  %v537 = vunpack.c.l.b16 %v434
  %v538 = vunpack.c.l.b16 %v435
  %v539 = vunpack.c.l.b16 %v436
  %v540 = vunpack.c.l.b16 %v437
  %v541 = vunpack.c.l.b16 %v438
  %v542 = vunpack.c.l.b16 %v439
  %v543 = vunpack.c.l.b16 %v440
  %v544 = vunpack.c.l.b16 %v441
  %v545 = vunpack.c.l.b16 %v442
  %v546 = vunpack.c.l.b16 %v443
  %v547 = vunpack.c.l.b16 %v444
  %v548 = vunpack.c.l.b16 %v445
  %v549 = vunpack.c.l.b16 %v446
  %v550 = vunpack.c.l.b16 %v447
  %v551 = vunpack.c.l.b16 %v448
  %v552 = vunpack.c.l.b16 %v449
  %v553 = vunpack.c.l.b16 %v450
  %v554 = vunpack.c.l.b16 %v451
  %v555 = vunpack.c.l.b16 %v452
  %v556 = vunpack.c.l.b16 %v453
  %v557 = vunpack.c.l.b16 %v454
  %v558 = vunpack.c.l.b16 %v455
  %v559 = vunpack.c.l.b16 %v456
  %v560 = vunpack.c.l.b16 %v457
  %v561 = vunpack.c.l.b16 %v458
  %v562 = vunpack.c.l.b16 %v459
  %v563 = vunpack.c.l.b16 %v460
  %v564 = vunpack.c.l.b16 %v461
  %v565 = vunpack.c.l.b16 %v462
  %v566 = vunpack.c.l.b16 %v463
  %v567 = vunpack.c.l.b16 %v464
  %v568 = vunpack.c.l.b16 %v465
  %v569 = vunpack.c.l.b16 %v466
  %v570 = vunpack.c.l.b16 %v467
  %v571 = vunpack.c.l.b16 %v468
  %v572 = vunpack.c.l.b16 %v469
  %v573 = vunpack.c.l.b16 %v470
  %v574 = vunpack.c.l.b16 %v471
  %v575 = vunpack.c.l.b16 %v472
  %v576 = vpack.c.b16 %v529, %v528
  %v577 = vpack.c.b16 %v531, %v530
  %v578 = vpack.c.b16 %v533, %v532
  %v579 = vpack.c.b16 %v535, %v534
  %v580 = vpack.c.b16 %v537, %v536
  %v581 = vpack.c.b16 %v539, %v538
  %v582 = vpack.c.b16 %v541, %v540
  %v583 = vpack.c.b16 %v543, %v542
  %v584 = vpack.c.b16 %v545, %v544
  %v585 = vpack.c.b16 %v547, %v546
  %v586 = vpack.c.b16 %v549, %v548
  %v587 = vpack.c.b16 %v551, %v550
  %v588 = vpack.c.b16 %v553, %v552
  %v589 = vpack.c.b16 %v555, %v554
  %v590 = vpack.c.b16 %v557, %v556
  %v591 = vpack.c.b16 %v559, %v558
  %v592 = vpack.c.b16 %v561, %v560
  %v593 = vpack.c.b16 %v563, %v562
  %v594 = vpack.c.b16 %v565, %v564
  %v595 = vpack.c.b16 %v567, %v566
  %v596 = vpack.c.b16 %v569, %v568
  %v597 = vpack.c.b16 %v571, %v570
  %v598 = vpack.c.b16 %v573, %v572
  %v599 = vpack.c.b16 %v575, %v574
  %624 = vmatprep.subr.bf16.mxu0 0
  %625 = vmatpush1.bf16.msra.mxu0 %v583
  %626 = vmatprep.subr.bf16.mxu0 0
  %627 = vmatpush1.bf16.msra.mxu0 %v582
  %628 = vmatprep.subr.bf16.mxu0 0
  %629 = vmatpush1.bf16.msra.mxu0 %v581
  %630 = vmatprep.subr.bf16.mxu0 0
  %631 = vmatpush1.bf16.msra.mxu0 %v580
  %632 = vmatprep.subr.bf16.mxu0 0
  %633 = vmatpush1.bf16.msra.mxu0 %v579
  %634 = vmatprep.subr.bf16.mxu0 0
  %635 = vmatpush1.bf16.msra.mxu0 %v578
  %636 = vmatprep.subr.bf16.mxu0 0
  %637 = vmatpush1.bf16.msra.mxu0 %v577
  %638 = vmatprep.subr.bf16.mxu0 0
  %639 = vmatpush1.bf16.msra.mxu0 %v576
  %640 = vmatprep.subr.bf16.mxu0 0
  %641 = vmatpush2.bf16.msra.mxu0 %v591
  %642 = vmatprep.subr.bf16.mxu0 0
  %643 = vmatpush2.bf16.msra.mxu0 %v590
  %644 = vmatprep.subr.bf16.mxu0 0
  %645 = vmatpush2.bf16.msra.mxu0 %v589
  %646 = vmatprep.subr.bf16.mxu0 0
  %647 = vmatpush2.bf16.msra.mxu0 %v588
  %648 = vmatprep.subr.bf16.mxu0 0
  %649 = vmatpush2.bf16.msra.mxu0 %v587
  %650 = vmatprep.subr.bf16.mxu0 0
  %651 = vmatpush2.bf16.msra.mxu0 %v586
  %652 = vmatprep.subr.bf16.mxu0 0
  %653 = vmatpush2.bf16.msra.mxu0 %v585
  %654 = vmatprep.subr.bf16.mxu0 0
  %655 = vmatpush2.bf16.msra.mxu0 %v584
  %656 = vmatprep.mubr.bf16.mxu0 %v420
  %657 = vmatmul.mubr.bf16.gmra.mxu0 %v419
  %v658 = vpop.f32.mrf.mxu0
  %v659 = vadd.f32 %v478, %v658
  %v660 = vpop.f32.mrf.mxu0
  %v661 = vpop.f32.mrf.mxu0
  %v662 = vadd.f32 %v478, %v661
  %v663 = vpop.f32.mrf.mxu0
  %664 = vmatprep.mubr.bf16.mxu0 %v423
  %665 = vmatmul.mubr.bf16.gmra.mxu0 %v422
  %v666 = vpop.f32.mrf.mxu0
  %v667 = vadd.f32 %v478, %v666
  %v668 = vpop.f32.mrf.mxu0
  %v669 = vpop.f32.mrf.mxu0
  %v670 = vadd.f32 %v478, %v669
  %v671 = vpop.f32.mrf.mxu0
  %672 = vdwg.mxu0
  %673 = vmatprep.subr.bf16.mxu0 0
  %674 = vmatpush1.bf16.msra.mxu0 %v599
  %675 = vmatprep.subr.bf16.mxu0 0
  %676 = vmatpush1.bf16.msra.mxu0 %v598
  %677 = vmatprep.subr.bf16.mxu0 0
  %678 = vmatpush1.bf16.msra.mxu0 %v597
  %679 = vmatprep.subr.bf16.mxu0 0
  %680 = vmatpush1.bf16.msra.mxu0 %v596
  %681 = vmatprep.subr.bf16.mxu0 0
  %682 = vmatpush1.bf16.msra.mxu0 %v595
  %683 = vmatprep.subr.bf16.mxu0 0
  %684 = vmatpush1.bf16.msra.mxu0 %v594
  %685 = vmatprep.subr.bf16.mxu0 0
  %686 = vmatpush1.bf16.msra.mxu0 %v593
  %687 = vmatprep.subr.bf16.mxu0 0
  %688 = vmatpush1.bf16.msra.mxu0 %v592
  %689 = vmatprep.subr.bf16.mxu0 0
  %690 = vmatpush2.bf16.msra.mxu0 0
  %691 = vmatprep.subr.bf16.mxu0 0
  %692 = vmatpush2.bf16.msra.mxu0 0
  %693 = vmatprep.subr.bf16.mxu0 0
  %694 = vmatpush2.bf16.msra.mxu0 0
  %695 = vmatprep.subr.bf16.mxu0 0
  %696 = vmatpush2.bf16.msra.mxu0 0
  %697 = vmatprep.subr.bf16.mxu0 0
  %698 = vmatpush2.bf16.msra.mxu0 0
  %699 = vmatprep.subr.bf16.mxu0 0
  %700 = vmatpush2.bf16.msra.mxu0 0
  %701 = vmatprep.subr.bf16.mxu0 0
  %702 = vmatpush2.bf16.msra.mxu0 0
  %703 = vmatprep.subr.bf16.mxu0 0
  %704 = vmatpush2.bf16.msra.mxu0 0
  %705 = vmatprep.mubr.bf16.mxu0 0
  %706 = vmatmul.mubr.bf16.gmra.mxu0 %v421
  %v707 = vpop.f32.mrf.mxu0
  %v708 = vadd.f32 %v659, %v707
  %v709 = vpop.f32.mrf.mxu0
  %v710 = vpop.f32.mrf.mxu0
  %v711 = vadd.f32 %v662, %v710
  %v712 = vpop.f32.mrf.mxu0
  %713 = vmatprep.mubr.bf16.mxu0 0
  %714 = vmatmul.mubr.bf16.gmra.mxu0 %v424
  %v715 = vpop.f32.mrf.mxu0
  %v716 = vadd.f32 %v667, %v715
  %v717 = vpop.f32.mrf.mxu0
  %v718 = vpop.f32.mrf.mxu0
  %v719 = vadd.f32 %v670, %v718
  %v720 = vpop.f32.mrf.mxu0
  %721 = vdwg.mxu0
  %v722 = vmul.f32 %v708, 0.2
  %v723 = vmul.f32 %v711, 0.2
  %v724 = vmul.f32 %v716, 0.2
  %v725 = vmul.f32 %v719, 0.2
  %v726 = vmax.f32 %v708, %v722
  %v727 = vmax.f32 %v711, %v723
  %v728 = vmax.f32 %v716, %v724
  %v729 = vmax.f32 %v719, %v725
  %v730 = vpack.c.bf16 %v727, %v726
  %v731 = vpack.c.bf16 %v729, %v728
  %v732 = vld [vmem:[%s4] sm:$0xf]
  %v733 = vld [vmem:[%s4 + $0x4] sm:$0x3]
  %v736 = vunpack.c.l.b16 %v732
  %v737 = vunpack.c.l.b16 %v733
  %v738 = vpack.c.b16 %v737, %v736
  %vm739 = vcmask 244736
  %v741 = vsel %vm739, %v738, 0
  %vm743 = vcmask 1046528
  %v745 = vsel %vm743, %v731, 0
  %747 = vmatprep.subr.bf16.mxu0 0
  %748 = vmatpush1.bf16.msra.mxu0 0
  %749 = vmatprep.subr.bf16.mxu0 0
  %750 = vmatpush1.bf16.msra.mxu0 0
  %751 = vmatprep.subr.bf16.mxu0 0
  %752 = vmatpush1.bf16.msra.mxu0 0
  %753 = vmatprep.subr.bf16.mxu0 0
  %754 = vmatpush1.bf16.msra.mxu0 0
  %755 = vmatprep.subr.bf16.mxu0 0
  %756 = vmatpush1.bf16.msra.mxu0 0
  %757 = vmatprep.subr.bf16.mxu0 0
  %758 = vmatpush1.bf16.msra.mxu0 0
  %759 = vmatprep.subr.bf16.mxu0 0
  %760 = vmatpush1.bf16.msra.mxu0 %v745
  %761 = vmatprep.subr.bf16.mxu0 0
  %762 = vmatpush1.bf16.msra.mxu0 %v730
  %763 = vmatprep.subr.bf16.mxu0 0
  %764 = vmatpush2.bf16.msra.mxu0 0
  %765 = vmatprep.subr.bf16.mxu0 0
  %766 = vmatpush2.bf16.msra.mxu0 0
  %767 = vmatprep.subr.bf16.mxu0 0
  %768 = vmatpush2.bf16.msra.mxu0 0
  %769 = vmatprep.subr.bf16.mxu0 0
  %770 = vmatpush2.bf16.msra.mxu0 0
  %771 = vmatprep.subr.bf16.mxu0 0
  %772 = vmatpush2.bf16.msra.mxu0 0
  %773 = vmatprep.subr.bf16.mxu0 0
  %774 = vmatpush2.bf16.msra.mxu0 0
  %775 = vmatprep.subr.bf16.mxu0 0
  %776 = vmatpush2.bf16.msra.mxu0 0
  %777 = vmatprep.subr.bf16.mxu0 0
  %778 = vmatpush2.bf16.msra.mxu0 0
  %779 = vmatprep.mubr.bf16.mxu0 0
  %780 = vmatmul.mubr.bf16.gmra.mxu0 %v741
  %v781 = vpop.f32.mrf.mxu0
  %v782 = vadd.f32 0.0, %v781
  %v783 = vpop.f32.mrf.mxu0
  %v784 = vpop.f32.mrf.mxu0
  %v785 = vadd.f32 0.0, %v784
  %v786 = vpop.f32.mrf.mxu0
  %787 = vdwg.mxu0
  %s788 = scalar_lea.vmem %s4, 8
  %v789 = vld [vmem:[%s788] sm:$0xf]
  %v790 = vld [vmem:[%s788 + $0x4] sm:$0x3]
  %v793 = vunpack.c.l.b16 %v789
  %v794 = vunpack.c.l.b16 %v790
  %v795 = vpack.c.b16 %v794, %v793
  %v797 = vsel %vm739, %v795, 0
  %799 = vmatprep.subr.bf16.mxu0 0
  %800 = vmatpush1.bf16.msra.mxu0 0
  %801 = vmatprep.subr.bf16.mxu0 0
  %802 = vmatpush1.bf16.msra.mxu0 0
  %803 = vmatprep.subr.bf16.mxu0 0
  %804 = vmatpush1.bf16.msra.mxu0 0
  %805 = vmatprep.subr.bf16.mxu0 0
  %806 = vmatpush1.bf16.msra.mxu0 0
  %807 = vmatprep.subr.bf16.mxu0 0
  %808 = vmatpush1.bf16.msra.mxu0 0
  %809 = vmatprep.subr.bf16.mxu0 0
  %810 = vmatpush1.bf16.msra.mxu0 0
  %811 = vmatprep.subr.bf16.mxu0 0
  %812 = vmatpush1.bf16.msra.mxu0 %v745
  %813 = vmatprep.subr.bf16.mxu0 0
  %814 = vmatpush1.bf16.msra.mxu0 %v730
  %815 = vmatprep.subr.bf16.mxu0 0
  %816 = vmatpush2.bf16.msra.mxu0 0
  %817 = vmatprep.subr.bf16.mxu0 0
  %818 = vmatpush2.bf16.msra.mxu0 0
  %819 = vmatprep.subr.bf16.mxu0 0
  %820 = vmatpush2.bf16.msra.mxu0 0
  %821 = vmatprep.subr.bf16.mxu0 0
  %822 = vmatpush2.bf16.msra.mxu0 0
  %823 = vmatprep.subr.bf16.mxu0 0
  %824 = vmatpush2.bf16.msra.mxu0 0
  %825 = vmatprep.subr.bf16.mxu0 0
  %826 = vmatpush2.bf16.msra.mxu0 0
  %827 = vmatprep.subr.bf16.mxu0 0
  %828 = vmatpush2.bf16.msra.mxu0 0
  %829 = vmatprep.subr.bf16.mxu0 0
  %830 = vmatpush2.bf16.msra.mxu0 0
  %831 = vmatprep.mubr.bf16.mxu0 0
  %832 = vmatmul.mubr.bf16.gmra.mxu0 %v797
  %v833 = vpop.f32.mrf.mxu0
  %v834 = vadd.f32 0.0, %v833
  %v835 = vpop.f32.mrf.mxu0
  %v836 = vpop.f32.mrf.mxu0
  %v837 = vadd.f32 0.0, %v836
  %v838 = vpop.f32.mrf.mxu0
  %839 = vdwg.mxu0
  %s840 = scalar_lea.vmem %s4, 16
  %v841 = vld [vmem:[%s840] sm:$0xf]
  %v842 = vld [vmem:[%s840 + $0x4] sm:$0x3]
  %v845 = vunpack.c.l.b16 %v841
  %v846 = vunpack.c.l.b16 %v842
  %v847 = vpack.c.b16 %v846, %v845
  %v849 = vsel %vm739, %v847, 0
  %851 = vmatprep.subr.bf16.mxu0 0
  %852 = vmatpush1.bf16.msra.mxu0 0
  %853 = vmatprep.subr.bf16.mxu0 0
  %854 = vmatpush1.bf16.msra.mxu0 0
  %855 = vmatprep.subr.bf16.mxu0 0
  %856 = vmatpush1.bf16.msra.mxu0 0
  %857 = vmatprep.subr.bf16.mxu0 0
  %858 = vmatpush1.bf16.msra.mxu0 0
  %859 = vmatprep.subr.bf16.mxu0 0
  %860 = vmatpush1.bf16.msra.mxu0 0
  %861 = vmatprep.subr.bf16.mxu0 0
  %862 = vmatpush1.bf16.msra.mxu0 0
  %863 = vmatprep.subr.bf16.mxu0 0
  %864 = vmatpush1.bf16.msra.mxu0 %v745
  %865 = vmatprep.subr.bf16.mxu0 0
  %866 = vmatpush1.bf16.msra.mxu0 %v730
  %867 = vmatprep.subr.bf16.mxu0 0
  %868 = vmatpush2.bf16.msra.mxu0 0
  %869 = vmatprep.subr.bf16.mxu0 0
  %870 = vmatpush2.bf16.msra.mxu0 0
  %871 = vmatprep.subr.bf16.mxu0 0
  %872 = vmatpush2.bf16.msra.mxu0 0
  %873 = vmatprep.subr.bf16.mxu0 0
  %874 = vmatpush2.bf16.msra.mxu0 0
  %875 = vmatprep.subr.bf16.mxu0 0
  %876 = vmatpush2.bf16.msra.mxu0 0
  %877 = vmatprep.subr.bf16.mxu0 0
  %878 = vmatpush2.bf16.msra.mxu0 0
  %879 = vmatprep.subr.bf16.mxu0 0
  %880 = vmatpush2.bf16.msra.mxu0 0
  %881 = vmatprep.subr.bf16.mxu0 0
  %882 = vmatpush2.bf16.msra.mxu0 0
  %883 = vmatprep.mubr.bf16.mxu0 0
  %884 = vmatmul.mubr.bf16.gmra.mxu0 %v849
  %v885 = vpop.f32.mrf.mxu0
  %v886 = vadd.f32 0.0, %v885
  %v887 = vpop.f32.mrf.mxu0
  %v888 = vpop.f32.mrf.mxu0
  %v889 = vadd.f32 0.0, %v888
  %v890 = vpop.f32.mrf.mxu0
  %891 = vdwg.mxu0
  %s892 = scalar_lea.vmem %s4, 24
  %v893 = vld [vmem:[%s892] sm:$0xf]
  %v894 = vld [vmem:[%s892 + $0x4] sm:$0x3]
  %v897 = vunpack.c.l.b16 %v893
  %v898 = vunpack.c.l.b16 %v894
  %v899 = vpack.c.b16 %v898, %v897
  %v901 = vsel %vm739, %v899, 0
  %903 = vmatprep.subr.bf16.mxu0 0
  %904 = vmatpush1.bf16.msra.mxu0 0
  %905 = vmatprep.subr.bf16.mxu0 0
  %906 = vmatpush1.bf16.msra.mxu0 0
  %907 = vmatprep.subr.bf16.mxu0 0
  %908 = vmatpush1.bf16.msra.mxu0 0
  %909 = vmatprep.subr.bf16.mxu0 0
  %910 = vmatpush1.bf16.msra.mxu0 0
  %911 = vmatprep.subr.bf16.mxu0 0
  %912 = vmatpush1.bf16.msra.mxu0 0
  %913 = vmatprep.subr.bf16.mxu0 0
  %914 = vmatpush1.bf16.msra.mxu0 0
  %915 = vmatprep.subr.bf16.mxu0 0
  %916 = vmatpush1.bf16.msra.mxu0 %v745
  %917 = vmatprep.subr.bf16.mxu0 0
  %918 = vmatpush1.bf16.msra.mxu0 %v730
  %919 = vmatprep.subr.bf16.mxu0 0
  %920 = vmatpush2.bf16.msra.mxu0 0
  %921 = vmatprep.subr.bf16.mxu0 0
  %922 = vmatpush2.bf16.msra.mxu0 0
  %923 = vmatprep.subr.bf16.mxu0 0
  %924 = vmatpush2.bf16.msra.mxu0 0
  %925 = vmatprep.subr.bf16.mxu0 0
  %926 = vmatpush2.bf16.msra.mxu0 0
  %927 = vmatprep.subr.bf16.mxu0 0
  %928 = vmatpush2.bf16.msra.mxu0 0
  %929 = vmatprep.subr.bf16.mxu0 0
  %930 = vmatpush2.bf16.msra.mxu0 0
  %931 = vmatprep.subr.bf16.mxu0 0
  %932 = vmatpush2.bf16.msra.mxu0 0
  %933 = vmatprep.subr.bf16.mxu0 0
  %934 = vmatpush2.bf16.msra.mxu0 0
  %935 = vmatprep.mubr.bf16.mxu0 0
  %936 = vmatmul.mubr.bf16.gmra.mxu0 %v901
  %v937 = vpop.f32.mrf.mxu0
  %v938 = vadd.f32 0.0, %v937
  %v939 = vpop.f32.mrf.mxu0
  %v940 = vpop.f32.mrf.mxu0
  %v941 = vadd.f32 0.0, %v940
  %v942 = vpop.f32.mrf.mxu0
  %943 = vdwg.mxu0
  %946 = vrot.lane.b32.xlu0 %v834, 120
  %v947 = vpop.permute.xlu0 %946
  %948 = vrot.lane.b32.xlu0 %v837, 120
  %v949 = vpop.permute.xlu0 %948
  %954 = vrot.lane.b32.xlu0 %v886, 112
  %v955 = vpop.permute.xlu0 %954
  %956 = vrot.lane.b32.xlu0 %v889, 112
  %v957 = vpop.permute.xlu0 %956
  %962 = vrot.lane.b32.xlu0 %v938, 104
  %v963 = vpop.permute.xlu0 %962
  %964 = vrot.lane.b32.xlu0 %v941, 104
  %v965 = vpop.permute.xlu0 %964
  %vm968 = vcmask 982016
  %v969 = vsel %vm968, %v782, %v947
  %v970 = vsel %vm968, %v785, %v949
  %vm971 = vcmask 916480
  %v972 = vsel %vm971, %v947, %v955
  %v973 = vsel %vm971, %v949, %v957
  %vm974 = vcmask 850944
  %v975 = vsel %vm974, %v955, %v963
  %v976 = vsel %vm974, %v957, %v965
  %v977 = vpack.c.bf16 %v970, %v969
  %v978 = vpack.c.bf16 %v973, %v972
  %v979 = vpack.c.bf16 %v976, %v975
  %v980 = vpack.c.bf16 %v965, %v963
  %v981 = vld [vmem:[%s5] sm:$0xf]
  %v982 = vld [vmem:[%s5 + $0x4] sm:$0xf]
  %v983 = vld [vmem:[%s5 + $0x8] sm:$0xf]
  %v984 = vld [vmem:[%s5 + $0xc] sm:$0xf]
  %v985 = vld [vmem:[%s5 + $0x10] sm:$0xf]
  %v986 = vld [vmem:[%s5 + $0x14] sm:$0xf]
  %v987 = vld [vmem:[%s5 + $0x18] sm:$0xf]
  %v988 = vld [vmem:[%s5 + $0x1c] sm:$0xf]
  %v989 = vld [vmem:[%s5 + $0x20] sm:$0xf]
  %v990 = vld [vmem:[%s5 + $0x24] sm:$0xf]
  %v991 = vld [vmem:[%s5 + $0x28] sm:$0xf]
  %v992 = vld [vmem:[%s5 + $0x2c] sm:$0xf]
  %v993 = vld [vmem:[%s5 + $0x30] sm:$0xf]
  %v994 = vld [vmem:[%s5 + $0x34] sm:$0xf]
  %v995 = vld [vmem:[%s5 + $0x38] sm:$0xf]
  %v996 = vld [vmem:[%s5 + $0x3c] sm:$0xf]
  %v997 = vld [vmem:[%s5 + $0x40] sm:$0xf]
  %v998 = vld [vmem:[%s5 + $0x44] sm:$0xf]
  %v999 = vld [vmem:[%s5 + $0x48] sm:$0xf]
  %v1000 = vld [vmem:[%s5 + $0x4c] sm:$0xf]
  %v1001 = vld [vmem:[%s5 + $0x50] sm:$0xf]
  %v1002 = vld [vmem:[%s5 + $0x54] sm:$0xf]
  %v1003 = vld [vmem:[%s5 + $0x58] sm:$0xf]
  %v1004 = vld [vmem:[%s5 + $0x5c] sm:$0xf]
  %v1005 = vld [vmem:[%s5 + $0x60] sm:$0xf]
  %v1006 = vld [vmem:[%s5 + $0x64] sm:$0xf]
  %v1007 = vld [vmem:[%s5 + $0x68] sm:$0xf]
  %v1008 = vld [vmem:[%s5 + $0x6c] sm:$0xf]
  %v1009 = vld [vmem:[%s5 + $0x70] sm:$0xf]
  %v1010 = vld [vmem:[%s5 + $0x74] sm:$0xf]
  %v1011 = vld [vmem:[%s5 + $0x78] sm:$0xf]
  %v1012 = vld [vmem:[%s5 + $0x7c] sm:$0xf]
  %v1013 = vld [vmem:[%s5 + $0x80] sm:$0xf]
  %v1014 = vld [vmem:[%s5 + $0x84] sm:$0xf]
  %v1015 = vld [vmem:[%s5 + $0x88] sm:$0xf]
  %v1016 = vld [vmem:[%s5 + $0x8c] sm:$0xf]
  %v1017 = vld [vmem:[%s5 + $0x90] sm:$0xf]
  %v1018 = vld [vmem:[%s5 + $0x94] sm:$0xf]
  %v1019 = vld [vmem:[%s5 + $0x98] sm:$0xf]
  %v1020 = vld [vmem:[%s5 + $0x9c] sm:$0xf]
  %v1021 = vld [vmem:[%s5 + $0xa0] sm:$0xf]
  %v1022 = vld [vmem:[%s5 + $0xa4] sm:$0xf]
  %v1023 = vld [vmem:[%s5 + $0xa8] sm:$0xf]
  %v1024 = vld [vmem:[%s5 + $0xac] sm:$0xf]
  %v1025 = vld [vmem:[%s5 + $0xb0] sm:$0xf]
  %v1026 = vld [vmem:[%s5 + $0xb4] sm:$0xf]
  %v1027 = vld [vmem:[%s5 + $0xb8] sm:$0xf]
  %v1028 = vld [vmem:[%s5 + $0xbc] sm:$0xf]
  %v1029 = vld [vmem:[%s5 + $0xc0] sm:$0xf]
  %v1030 = vld [vmem:[%s5 + $0xc4] sm:$0xf]
  %v1031 = vld [vmem:[%s5 + $0xc8] sm:$0xf]
  %v1032 = vld [vmem:[%s5 + $0xcc] sm:$0xf]
  %v1033 = vld [vmem:[%s5 + $0xd0] sm:$0xf]
  %v1034 = vld [vmem:[%s5 + $0xd4] sm:$0xf]
  %v1035 = vld [vmem:[%s5 + $0xd8] sm:$0xf]
  %v1036 = vld [vmem:[%s5 + $0xdc] sm:$0xf]
  %v1037 = vld [vmem:[%s5 + $0xe0] sm:$0xf]
  %v1038 = vld [vmem:[%s5 + $0xe4] sm:$0xf]
  %v1039 = vld [vmem:[%s5 + $0xe8] sm:$0xf]
  %v1040 = vld [vmem:[%s5 + $0xec] sm:$0xf]
  %v1041 = vld [vmem:[%s6] sm:$0x1]
  %v1043 = vlaneseq
  %v1044 = vshrl.u32 %v1043, 7
  %v1045 = vsub.s32 0, %v1044
  %v1046 = vrot.slane %v1041, %v1045
  %v1108 = vunpack.c.l.b16 %v981
  %v1109 = vunpack.c.l.b16 %v982
  %v1110 = vunpack.c.l.b16 %v983
  %v1111 = vunpack.c.l.b16 %v984
  %v1112 = vunpack.c.l.b16 %v985
  %v1113 = vunpack.c.l.b16 %v986
  %v1114 = vunpack.c.l.b16 %v987
  %v1115 = vunpack.c.l.b16 %v988
  %v1116 = vunpack.c.l.b16 %v989
  %v1117 = vunpack.c.l.b16 %v990
  %v1118 = vunpack.c.l.b16 %v991
  %v1119 = vunpack.c.l.b16 %v992
  %v1120 = vunpack.c.l.b16 %v993
  %v1121 = vunpack.c.l.b16 %v994
  %v1122 = vunpack.c.l.b16 %v995
  %v1123 = vunpack.c.l.b16 %v996
  %v1124 = vunpack.c.l.b16 %v997
  %v1125 = vunpack.c.l.b16 %v998
  %v1126 = vunpack.c.l.b16 %v999
  %v1127 = vunpack.c.l.b16 %v1000
  %v1128 = vunpack.c.l.b16 %v1001
  %v1129 = vunpack.c.l.b16 %v1002
  %v1130 = vunpack.c.l.b16 %v1003
  %v1131 = vunpack.c.l.b16 %v1004
  %v1132 = vunpack.c.l.b16 %v1005
  %v1133 = vunpack.c.l.b16 %v1006
  %v1134 = vunpack.c.l.b16 %v1007
  %v1135 = vunpack.c.l.b16 %v1008
  %v1136 = vunpack.c.l.b16 %v1009
  %v1137 = vunpack.c.l.b16 %v1010
  %v1138 = vunpack.c.l.b16 %v1011
  %v1139 = vunpack.c.l.b16 %v1012
  %v1140 = vunpack.c.l.b16 %v1013
  %v1141 = vunpack.c.l.b16 %v1014
  %v1142 = vunpack.c.l.b16 %v1015
  %v1143 = vunpack.c.l.b16 %v1016
  %v1144 = vunpack.c.l.b16 %v1017
  %v1145 = vunpack.c.l.b16 %v1018
  %v1146 = vunpack.c.l.b16 %v1019
  %v1147 = vunpack.c.l.b16 %v1020
  %v1148 = vunpack.c.l.b16 %v1021
  %v1149 = vunpack.c.l.b16 %v1022
  %v1150 = vunpack.c.l.b16 %v1023
  %v1151 = vunpack.c.l.b16 %v1024
  %v1152 = vunpack.c.l.b16 %v1025
  %v1153 = vunpack.c.l.b16 %v1026
  %v1154 = vunpack.c.l.b16 %v1027
  %v1155 = vunpack.c.l.b16 %v1028
  %v1156 = vunpack.c.l.b16 %v1029
  %v1157 = vunpack.c.l.b16 %v1030
  %v1158 = vunpack.c.l.b16 %v1031
  %v1159 = vunpack.c.l.b16 %v1032
  %v1160 = vunpack.c.l.b16 %v1033
  %v1161 = vunpack.c.l.b16 %v1034
  %v1162 = vunpack.c.l.b16 %v1035
  %v1163 = vunpack.c.l.b16 %v1036
  %v1164 = vunpack.c.l.b16 %v1037
  %v1165 = vunpack.c.l.b16 %v1038
  %v1166 = vunpack.c.l.b16 %v1039
  %v1167 = vunpack.c.l.b16 %v1040
  %v1168 = vpack.c.b16 %v1109, %v1108
  %v1169 = vpack.c.b16 %v1111, %v1110
  %v1170 = vpack.c.b16 %v1113, %v1112
  %v1171 = vpack.c.b16 %v1115, %v1114
  %v1172 = vpack.c.b16 %v1117, %v1116
  %v1173 = vpack.c.b16 %v1119, %v1118
  %v1174 = vpack.c.b16 %v1121, %v1120
  %v1175 = vpack.c.b16 %v1123, %v1122
  %v1176 = vpack.c.b16 %v1125, %v1124
  %v1177 = vpack.c.b16 %v1127, %v1126
  %v1178 = vpack.c.b16 %v1129, %v1128
  %v1179 = vpack.c.b16 %v1131, %v1130
  %v1180 = vpack.c.b16 %v1133, %v1132
  %v1181 = vpack.c.b16 %v1135, %v1134
  %v1182 = vpack.c.b16 %v1137, %v1136
  %v1183 = vpack.c.b16 %v1139, %v1138
  %v1184 = vpack.c.b16 %v1141, %v1140
  %v1185 = vpack.c.b16 %v1143, %v1142
  %v1186 = vpack.c.b16 %v1145, %v1144
  %v1187 = vpack.c.b16 %v1147, %v1146
  %v1188 = vpack.c.b16 %v1149, %v1148
  %v1189 = vpack.c.b16 %v1151, %v1150
  %v1190 = vpack.c.b16 %v1153, %v1152
  %v1191 = vpack.c.b16 %v1155, %v1154
  %v1192 = vpack.c.b16 %v1157, %v1156
  %v1193 = vpack.c.b16 %v1159, %v1158
  %v1194 = vpack.c.b16 %v1161, %v1160
  %v1195 = vpack.c.b16 %v1163, %v1162
  %v1196 = vpack.c.b16 %v1165, %v1164
  %v1197 = vpack.c.b16 %v1167, %v1166
  %v1229 = vsel %vm405, %v980, 0
  %1231 = vmatprep.subr.bf16.mxu0 0
  %1232 = vmatpush1.bf16.msra.mxu0 %v1175
  %1233 = vmatprep.subr.bf16.mxu0 0
  %1234 = vmatpush1.bf16.msra.mxu0 %v1174
  %1235 = vmatprep.subr.bf16.mxu0 0
  %1236 = vmatpush1.bf16.msra.mxu0 %v1173
  %1237 = vmatprep.subr.bf16.mxu0 0
  %1238 = vmatpush1.bf16.msra.mxu0 %v1172
  %1239 = vmatprep.subr.bf16.mxu0 0
  %1240 = vmatpush1.bf16.msra.mxu0 %v1171
  %1241 = vmatprep.subr.bf16.mxu0 0
  %1242 = vmatpush1.bf16.msra.mxu0 %v1170
  %1243 = vmatprep.subr.bf16.mxu0 0
  %1244 = vmatpush1.bf16.msra.mxu0 %v1169
  %1245 = vmatprep.subr.bf16.mxu0 0
  %1246 = vmatpush1.bf16.msra.mxu0 %v1168
  %1247 = vmatprep.subr.bf16.mxu0 0
  %1248 = vmatpush2.bf16.msra.mxu0 %v1183
  %1249 = vmatprep.subr.bf16.mxu0 0
  %1250 = vmatpush2.bf16.msra.mxu0 %v1182
  %1251 = vmatprep.subr.bf16.mxu0 0
  %1252 = vmatpush2.bf16.msra.mxu0 %v1181
  %1253 = vmatprep.subr.bf16.mxu0 0
  %1254 = vmatpush2.bf16.msra.mxu0 %v1180
  %1255 = vmatprep.subr.bf16.mxu0 0
  %1256 = vmatpush2.bf16.msra.mxu0 %v1179
  %1257 = vmatprep.subr.bf16.mxu0 0
  %1258 = vmatpush2.bf16.msra.mxu0 %v1178
  %1259 = vmatprep.subr.bf16.mxu0 0
  %1260 = vmatpush2.bf16.msra.mxu0 %v1177
  %1261 = vmatprep.subr.bf16.mxu0 0
  %1262 = vmatpush2.bf16.msra.mxu0 %v1176
  %1263 = vmatprep.mubr.bf16.mxu0 %v978
  %1264 = vmatmul.mubr.bf16.gmra.mxu0 %v977
  %v1265 = vpop.f32.mrf.mxu0
  %v1266 = vadd.f32 %v1046, %v1265
  %v1267 = vpop.f32.mrf.mxu0
  %v1268 = vpop.f32.mrf.mxu0
  %v1269 = vadd.f32 %v1046, %v1268
  %v1270 = vpop.f32.mrf.mxu0
  %1271 = vdwg.mxu0
  %1272 = vmatprep.subr.bf16.mxu0 0
  %1273 = vmatpush1.bf16.msra.mxu0 %v1191
  %1274 = vmatprep.subr.bf16.mxu0 0
  %1275 = vmatpush1.bf16.msra.mxu0 %v1190
  %1276 = vmatprep.subr.bf16.mxu0 0
  %1277 = vmatpush1.bf16.msra.mxu0 %v1189
  %1278 = vmatprep.subr.bf16.mxu0 0
  %1279 = vmatpush1.bf16.msra.mxu0 %v1188
  %1280 = vmatprep.subr.bf16.mxu0 0
  %1281 = vmatpush1.bf16.msra.mxu0 %v1187
  %1282 = vmatprep.subr.bf16.mxu0 0
  %1283 = vmatpush1.bf16.msra.mxu0 %v1186
  %1284 = vmatprep.subr.bf16.mxu0 0
  %1285 = vmatpush1.bf16.msra.mxu0 %v1185
  %1286 = vmatprep.subr.bf16.mxu0 0
  %1287 = vmatpush1.bf16.msra.mxu0 %v1184
  %1288 = vmatprep.subr.bf16.mxu0 0
  %1289 = vmatpush2.bf16.msra.mxu0 0
  %1290 = vmatprep.subr.bf16.mxu0 0
  %1291 = vmatpush2.bf16.msra.mxu0 0
  %1292 = vmatprep.subr.bf16.mxu0 0
  %1293 = vmatpush2.bf16.msra.mxu0 %v1197
  %1294 = vmatprep.subr.bf16.mxu0 0
  %1295 = vmatpush2.bf16.msra.mxu0 %v1196
  %1296 = vmatprep.subr.bf16.mxu0 0
  %1297 = vmatpush2.bf16.msra.mxu0 %v1195
  %1298 = vmatprep.subr.bf16.mxu0 0
  %1299 = vmatpush2.bf16.msra.mxu0 %v1194
  %1300 = vmatprep.subr.bf16.mxu0 0
  %1301 = vmatpush2.bf16.msra.mxu0 %v1193
  %1302 = vmatprep.subr.bf16.mxu0 0
  %1303 = vmatpush2.bf16.msra.mxu0 %v1192
  %1304 = vmatprep.mubr.bf16.mxu0 %v1229
  %1305 = vmatmul.mubr.bf16.gmra.mxu0 %v979
  %v1306 = vpop.f32.mrf.mxu0
  %v1307 = vadd.f32 %v1266, %v1306
  %v1308 = vpop.f32.mrf.mxu0
  %v1309 = vpop.f32.mrf.mxu0
  %v1310 = vadd.f32 %v1269, %v1309
  %v1311 = vpop.f32.mrf.mxu0
  %1312 = vdwg.mxu0
  %v1313 = vsel %vm405, %v1307, 0.0
  %vm1314 = vcmask 781312
  %v1315 = vsel %vm1314, %v1310, 0.0
  %v1316 = vadd.f32 %v1313, %v1315
  %v1317 = vrot.slane %v1316, 4
  %v1318 = vadd.f32 %v1316, %v1317
  %v1319 = vrot.slane %v1318, 2
  %v1320 = vadd.f32 %v1318, %v1319
  %v1321 = vrot.slane %v1320, 1
  %v1322 = vadd.f32 %v1320, %v1321
  %v1323 = vmul.f32 %v1322, 0.083333336
  %v1324 = vld [vmem:[%s7] sm:$0xff]
  %v1325 = vld [vmem:[%s7 + $0x8] sm:$0xff]
  %v1326 = vld [vmem:[%s7 + $0x10] sm:$0xff]
  %v1327 = vld [vmem:[%s7 + $0x18] sm:$0xff]
  %v1328 = vld [vmem:[%s7 + $0x20] sm:$0xff]
  %v1329 = vld [vmem:[%s7 + $0x28] sm:$0xff]
  %v1330 = vld [vmem:[%s7 + $0x30] sm:$0xff]
  %v1331 = vld [vmem:[%s7 + $0x38] sm:$0xff]
  %v1332 = vld [vmem:[%s7 + $0x40] sm:$0xff]
  %v1333 = vld [vmem:[%s7 + $0x48] sm:$0xff]
  %v1334 = vld [vmem:[%s7 + $0x50] sm:$0xff]
  %v1335 = vld [vmem:[%s7 + $0x58] sm:$0xff]
  %v1337 = vsel %vm405, %v1323, 0
  %1339 = vmatprep.subr.mxu0 0.0
  %1340 = vmatpush1.msra.mxu0 0.0
  %1341 = vmatprep.subr.mxu0 0.0
  %1342 = vmatpush1.msra.mxu0 0.0
  %1343 = vmatprep.subr.mxu0 0.0
  %1344 = vmatpush1.msra.mxu0 0.0
  %1345 = vmatprep.subr.mxu0 0.0
  %1346 = vmatpush1.msra.mxu0 0.0
  %1347 = vmatprep.subr.mxu0 0.0
  %1348 = vmatpush1.msra.mxu0 %v1335
  %1349 = vmatprep.subr.mxu0 0.0
  %1350 = vmatpush1.msra.mxu0 %v1334
  %1351 = vmatprep.subr.mxu0 0.0
  %1352 = vmatpush1.msra.mxu0 %v1333
  %1353 = vmatprep.subr.mxu0 0.0
  %1354 = vmatpush1.msra.mxu0 %v1332
  %1355 = vmatprep.subr.mxu0 0.0
  %1356 = vmatpush1.msra.mxu0 %v1331
  %1357 = vmatprep.subr.mxu0 0.0
  %1358 = vmatpush1.msra.mxu0 %v1330
  %1359 = vmatprep.subr.mxu0 0.0
  %1360 = vmatpush1.msra.mxu0 %v1329
  %1361 = vmatprep.subr.mxu0 0.0
  %1362 = vmatpush1.msra.mxu0 %v1328
  %1363 = vmatprep.subr.mxu0 0.0
  %1364 = vmatpush1.msra.mxu0 %v1327
  %1365 = vmatprep.subr.mxu0 0.0
  %1366 = vmatpush1.msra.mxu0 %v1326
  %1367 = vmatprep.subr.mxu0 0.0
  %1368 = vmatpush1.msra.mxu0 %v1325
  %1369 = vmatprep.subr.mxu0 0.0
  %1370 = vmatpush1.msra.mxu0 %v1324
  %1371 = vmatprep.subr.mxu0 0.0
  %1372 = vmatpush2.msra.mxu0 0.0
  %1373 = vmatprep.subr.mxu0 0.0
  %1374 = vmatpush2.msra.mxu0 0.0
  %1375 = vmatprep.subr.mxu0 0.0
  %1376 = vmatpush2.msra.mxu0 0.0
  %1377 = vmatprep.subr.mxu0 0.0
  %1378 = vmatpush2.msra.mxu0 0.0
  %1379 = vmatprep.subr.mxu0 0.0
  %1380 = vmatpush2.msra.mxu0 0.0
  %1381 = vmatprep.subr.mxu0 0.0
  %1382 = vmatpush2.msra.mxu0 0.0
  %1383 = vmatprep.subr.mxu0 0.0
  %1384 = vmatpush2.msra.mxu0 0.0
  %1385 = vmatprep.subr.mxu0 0.0
  %1386 = vmatpush2.msra.mxu0 0.0
  %1387 = vmatprep.subr.mxu0 0.0
  %1388 = vmatpush2.msra.mxu0 0.0
  %1389 = vmatprep.subr.mxu0 0.0
  %1390 = vmatpush2.msra.mxu0 0.0
  %1391 = vmatprep.subr.mxu0 0.0
  %1392 = vmatpush2.msra.mxu0 0.0
  %1393 = vmatprep.subr.mxu0 0.0
  %1394 = vmatpush2.msra.mxu0 0.0
  %1395 = vmatprep.subr.mxu0 0.0
  %1396 = vmatpush2.msra.mxu0 0.0
  %1397 = vmatprep.subr.mxu0 0.0
  %1398 = vmatpush2.msra.mxu0 0.0
  %1399 = vmatprep.subr.mxu0 0.0
  %1400 = vmatpush2.msra.mxu0 0.0
  %1401 = vmatprep.subr.mxu0 0.0
  %1402 = vmatpush2.msra.mxu0 0.0
  %1403 = vmatprep.mubr.f32.mxu0 0.0
  %1404 = vmatmul.mubr.f32.gmra.mxu0 %v1337
  %v1405 = vpop.f32.mrf.mxu0
  %v1406 = vadd.f32 0.0, %v1405
  %v1407 = vpop.f32.mrf.mxu0
  %1408 = vdwg.mxu0
  %v1409 = vlaneseq
  %v1410 = vshrl.u32 %v1409, 7
  %v1411 = vsub.s32 0, %v1410
  %v1412 = vrot.slane %v1406, %v1411
  %v1413 = vsub.f32 %v1307, %v1412
  %v1414 = vsub.f32 %v1310, %v1412
  %v1415 = vmul.f32 %v1413, %v1413
  %v1416 = vmul.f32 %v1414, %v1414
  %v1417 = vsel %vm405, %v1415, 0.0
  %v1418 = vsel %vm1314, %v1416, 0.0
  %v1419 = vadd.f32 %v1417, %v1418
  %v1420 = vrot.slane %v1419, 4
  %v1421 = vadd.f32 %v1419, %v1420
  %v1422 = vrot.slane %v1421, 2
  %v1423 = vadd.f32 %v1421, %v1422
  %v1424 = vrot.slane %v1423, 1
  %v1425 = vadd.f32 %v1423, %v1424
  %v1426 = vmul.f32 %v1425, 0.083333336
  %v1427 = vld [vmem:[%s8] sm:$0x1]
  %v1429 = vsel %vm405, %v1426, 0
  %1431 = vmatprep.subr.mxu0 0.0
  %1432 = vmatpush1.msra.mxu0 0.0
  %1433 = vmatprep.subr.mxu0 0.0
  %1434 = vmatpush1.msra.mxu0 0.0
  %1435 = vmatprep.subr.mxu0 0.0
  %1436 = vmatpush1.msra.mxu0 0.0
  %1437 = vmatprep.subr.mxu0 0.0
  %1438 = vmatpush1.msra.mxu0 0.0
  %1439 = vmatprep.subr.mxu0 0.0
  %1440 = vmatpush1.msra.mxu0 %v1335
  %1441 = vmatprep.subr.mxu0 0.0
  %1442 = vmatpush1.msra.mxu0 %v1334
  %1443 = vmatprep.subr.mxu0 0.0
  %1444 = vmatpush1.msra.mxu0 %v1333
  %1445 = vmatprep.subr.mxu0 0.0
  %1446 = vmatpush1.msra.mxu0 %v1332
  %1447 = vmatprep.subr.mxu0 0.0
  %1448 = vmatpush1.msra.mxu0 %v1331
  %1449 = vmatprep.subr.mxu0 0.0
  %1450 = vmatpush1.msra.mxu0 %v1330
  %1451 = vmatprep.subr.mxu0 0.0
  %1452 = vmatpush1.msra.mxu0 %v1329
  %1453 = vmatprep.subr.mxu0 0.0
  %1454 = vmatpush1.msra.mxu0 %v1328
  %1455 = vmatprep.subr.mxu0 0.0
  %1456 = vmatpush1.msra.mxu0 %v1327
  %1457 = vmatprep.subr.mxu0 0.0
  %1458 = vmatpush1.msra.mxu0 %v1326
  %1459 = vmatprep.subr.mxu0 0.0
  %1460 = vmatpush1.msra.mxu0 %v1325
  %1461 = vmatprep.subr.mxu0 0.0
  %1462 = vmatpush1.msra.mxu0 %v1324
  %1463 = vmatprep.subr.mxu0 0.0
  %1464 = vmatpush2.msra.mxu0 0.0
  %1465 = vmatprep.subr.mxu0 0.0
  %1466 = vmatpush2.msra.mxu0 0.0
  %1467 = vmatprep.subr.mxu0 0.0
  %1468 = vmatpush2.msra.mxu0 0.0
  %1469 = vmatprep.subr.mxu0 0.0
  %1470 = vmatpush2.msra.mxu0 0.0
  %1471 = vmatprep.subr.mxu0 0.0
  %1472 = vmatpush2.msra.mxu0 0.0
  %1473 = vmatprep.subr.mxu0 0.0
  %1474 = vmatpush2.msra.mxu0 0.0
  %1475 = vmatprep.subr.mxu0 0.0
  %1476 = vmatpush2.msra.mxu0 0.0
  %1477 = vmatprep.subr.mxu0 0.0
  %1478 = vmatpush2.msra.mxu0 0.0
  %1479 = vmatprep.subr.mxu0 0.0
  %1480 = vmatpush2.msra.mxu0 0.0
  %1481 = vmatprep.subr.mxu0 0.0
  %1482 = vmatpush2.msra.mxu0 0.0
  %1483 = vmatprep.subr.mxu0 0.0
  %1484 = vmatpush2.msra.mxu0 0.0
  %1485 = vmatprep.subr.mxu0 0.0
  %1486 = vmatpush2.msra.mxu0 0.0
  %1487 = vmatprep.subr.mxu0 0.0
  %1488 = vmatpush2.msra.mxu0 0.0
  %1489 = vmatprep.subr.mxu0 0.0
  %1490 = vmatpush2.msra.mxu0 0.0
  %1491 = vmatprep.subr.mxu0 0.0
  %1492 = vmatpush2.msra.mxu0 0.0
  %1493 = vmatprep.subr.mxu0 0.0
  %1494 = vmatpush2.msra.mxu0 0.0
  %1495 = vmatprep.mubr.f32.mxu0 0.0
  %1496 = vmatmul.mubr.f32.gmra.mxu0 %v1429
  %v1497 = vpop.f32.mrf.mxu0
  %v1498 = vadd.f32 1e-05, %v1497
  %v1499 = vpop.f32.mrf.mxu0
  %1500 = vdwg.mxu0
  %v1501 = vrsqrt.pop %v1498
  %v1502 = vmul.f32 %v1427, %v1501
  %v1504 = vlaneseq
  %v1505 = vshrl.u32 %v1504, 7
  %v1506 = vsub.s32 0, %v1505
  %v1507 = vrot.slane %v1502, %v1506
  %v1509 = vmul.f32 %v1413, %v1507
  %v1510 = vmul.f32 %v1414, %v1507
  %v1511 = vld [vmem:[%s9] sm:$0x1]
  %v1513 = vlaneseq
  %v1514 = vshrl.u32 %v1513, 7
  %v1515 = vsub.s32 0, %v1514
  %v1516 = vrot.slane %v1511, %v1515
  %v1518 = vadd.f32 %v1509, %v1516
  %v1519 = vadd.f32 %v1510, %v1516
  %v1520 = vmul.f32 %v1518, 0.2
  %v1521 = vmul.f32 %v1519, 0.2
  %v1522 = vmax.f32 %v1518, %v1520
  %v1523 = vmax.f32 %v1519, %v1521
  %v1524 = vpack.c.bf16 %v1523, %v1522
  %v1525 = vld [vmem:[%s10] sm:$0x3]
  %vm1526 = vcmask 97280
  %v1528 = vsel %vm1526, %v1525, 0
  %vm1530 = vcmask 1045504
  %v1532 = vsel %vm1530, %v1524, 0
  %1534 = vmatprep.subr.bf16.mxu0 0
  %1535 = vmatpush1.bf16.msra.mxu0 0
  %1536 = vmatprep.subr.bf16.mxu0 0
  %1537 = vmatpush1.bf16.msra.mxu0 0
  %1538 = vmatprep.subr.bf16.mxu0 0
  %1539 = vmatpush1.bf16.msra.mxu0 0
  %1540 = vmatprep.subr.bf16.mxu0 0
  %1541 = vmatpush1.bf16.msra.mxu0 0
  %1542 = vmatprep.subr.bf16.mxu0 0
  %1543 = vmatpush1.bf16.msra.mxu0 0
  %1544 = vmatprep.subr.bf16.mxu0 0
  %1545 = vmatpush1.bf16.msra.mxu0 0
  %1546 = vmatprep.subr.bf16.mxu0 0
  %1547 = vmatpush1.bf16.msra.mxu0 0
  %1548 = vmatprep.subr.bf16.mxu0 0
  %1549 = vmatpush1.bf16.msra.mxu0 %v1532
  %1550 = vmatprep.subr.bf16.mxu0 0
  %1551 = vmatpush2.bf16.msra.mxu0 0
  %1552 = vmatprep.subr.bf16.mxu0 0
  %1553 = vmatpush2.bf16.msra.mxu0 0
  %1554 = vmatprep.subr.bf16.mxu0 0
  %1555 = vmatpush2.bf16.msra.mxu0 0
  %1556 = vmatprep.subr.bf16.mxu0 0
  %1557 = vmatpush2.bf16.msra.mxu0 0
  %1558 = vmatprep.subr.bf16.mxu0 0
  %1559 = vmatpush2.bf16.msra.mxu0 0
  %1560 = vmatprep.subr.bf16.mxu0 0
  %1561 = vmatpush2.bf16.msra.mxu0 0
  %1562 = vmatprep.subr.bf16.mxu0 0
  %1563 = vmatpush2.bf16.msra.mxu0 0
  %1564 = vmatprep.subr.bf16.mxu0 0
  %1565 = vmatpush2.bf16.msra.mxu0 0
  %1566 = vmatprep.mubr.bf16.mxu0 0
  %1567 = vmatmul.mubr.bf16.gmra.mxu0 %v1528
  %v1568 = vpop.f32.mrf.mxu0
  %v1569 = vadd.f32 0.0, %v1568
  %v1570 = vpop.f32.mrf.mxu0
  %v1571 = vpop.f32.mrf.mxu0
  %v1572 = vpop.f32.mrf.mxu0
  %1573 = vdwg.mxu0
  %s1574 = scalar_lea.vmem %s10, 2
  %v1575 = vld [vmem:[%s1574] sm:$0x3]
  %v1577 = vsel %vm1526, %v1575, 0
  %1579 = vmatprep.subr.bf16.mxu0 0
  %1580 = vmatpush1.bf16.msra.mxu0 0
  %1581 = vmatprep.subr.bf16.mxu0 0
  %1582 = vmatpush1.bf16.msra.mxu0 0
  %1583 = vmatprep.subr.bf16.mxu0 0
  %1584 = vmatpush1.bf16.msra.mxu0 0
  %1585 = vmatprep.subr.bf16.mxu0 0
  %1586 = vmatpush1.bf16.msra.mxu0 0
  %1587 = vmatprep.subr.bf16.mxu0 0
  %1588 = vmatpush1.bf16.msra.mxu0 0
  %1589 = vmatprep.subr.bf16.mxu0 0
  %1590 = vmatpush1.bf16.msra.mxu0 0
  %1591 = vmatprep.subr.bf16.mxu0 0
  %1592 = vmatpush1.bf16.msra.mxu0 0
  %1593 = vmatprep.subr.bf16.mxu0 0
  %1594 = vmatpush1.bf16.msra.mxu0 %v1532
  %1595 = vmatprep.subr.bf16.mxu0 0
  %1596 = vmatpush2.bf16.msra.mxu0 0
  %1597 = vmatprep.subr.bf16.mxu0 0
  %1598 = vmatpush2.bf16.msra.mxu0 0
  %1599 = vmatprep.subr.bf16.mxu0 0
  %1600 = vmatpush2.bf16.msra.mxu0 0
  %1601 = vmatprep.subr.bf16.mxu0 0
  %1602 = vmatpush2.bf16.msra.mxu0 0
  %1603 = vmatprep.subr.bf16.mxu0 0
  %1604 = vmatpush2.bf16.msra.mxu0 0
  %1605 = vmatprep.subr.bf16.mxu0 0
  %1606 = vmatpush2.bf16.msra.mxu0 0
  %1607 = vmatprep.subr.bf16.mxu0 0
  %1608 = vmatpush2.bf16.msra.mxu0 0
  %1609 = vmatprep.subr.bf16.mxu0 0
  %1610 = vmatpush2.bf16.msra.mxu0 0
  %1611 = vmatprep.mubr.bf16.mxu0 0
  %1612 = vmatmul.mubr.bf16.gmra.mxu0 %v1577
  %v1613 = vpop.f32.mrf.mxu0
  %v1614 = vadd.f32 0.0, %v1613
  %v1615 = vpop.f32.mrf.mxu0
  %v1616 = vpop.f32.mrf.mxu0
  %v1617 = vpop.f32.mrf.mxu0
  %1618 = vdwg.mxu0
  %s1619 = scalar_lea.vmem %s10, 4
  %v1620 = vld [vmem:[%s1619] sm:$0x3]
  %v1622 = vsel %vm1526, %v1620, 0
  %1624 = vmatprep.subr.bf16.mxu0 0
  %1625 = vmatpush1.bf16.msra.mxu0 0
  %1626 = vmatprep.subr.bf16.mxu0 0
  %1627 = vmatpush1.bf16.msra.mxu0 0
  %1628 = vmatprep.subr.bf16.mxu0 0
  %1629 = vmatpush1.bf16.msra.mxu0 0
  %1630 = vmatprep.subr.bf16.mxu0 0
  %1631 = vmatpush1.bf16.msra.mxu0 0
  %1632 = vmatprep.subr.bf16.mxu0 0
  %1633 = vmatpush1.bf16.msra.mxu0 0
  %1634 = vmatprep.subr.bf16.mxu0 0
  %1635 = vmatpush1.bf16.msra.mxu0 0
  %1636 = vmatprep.subr.bf16.mxu0 0
  %1637 = vmatpush1.bf16.msra.mxu0 0
  %1638 = vmatprep.subr.bf16.mxu0 0
  %1639 = vmatpush1.bf16.msra.mxu0 %v1532
  %1640 = vmatprep.subr.bf16.mxu0 0
  %1641 = vmatpush2.bf16.msra.mxu0 0
  %1642 = vmatprep.subr.bf16.mxu0 0
  %1643 = vmatpush2.bf16.msra.mxu0 0
  %1644 = vmatprep.subr.bf16.mxu0 0
  %1645 = vmatpush2.bf16.msra.mxu0 0
  %1646 = vmatprep.subr.bf16.mxu0 0
  %1647 = vmatpush2.bf16.msra.mxu0 0
  %1648 = vmatprep.subr.bf16.mxu0 0
  %1649 = vmatpush2.bf16.msra.mxu0 0
  %1650 = vmatprep.subr.bf16.mxu0 0
  %1651 = vmatpush2.bf16.msra.mxu0 0
  %1652 = vmatprep.subr.bf16.mxu0 0
  %1653 = vmatpush2.bf16.msra.mxu0 0
  %1654 = vmatprep.subr.bf16.mxu0 0
  %1655 = vmatpush2.bf16.msra.mxu0 0
  %1656 = vmatprep.mubr.bf16.mxu0 0
  %1657 = vmatmul.mubr.bf16.gmra.mxu0 %v1622
  %v1658 = vpop.f32.mrf.mxu0
  %v1659 = vadd.f32 0.0, %v1658
  %v1660 = vpop.f32.mrf.mxu0
  %v1661 = vpop.f32.mrf.mxu0
  %v1662 = vpop.f32.mrf.mxu0
  %1663 = vdwg.mxu0
  %s1664 = scalar_lea.vmem %s10, 6
  %v1665 = vld [vmem:[%s1664] sm:$0x3]
  %v1667 = vsel %vm1526, %v1665, 0
  %1669 = vmatprep.subr.bf16.mxu0 0
  %1670 = vmatpush1.bf16.msra.mxu0 0
  %1671 = vmatprep.subr.bf16.mxu0 0
  %1672 = vmatpush1.bf16.msra.mxu0 0
  %1673 = vmatprep.subr.bf16.mxu0 0
  %1674 = vmatpush1.bf16.msra.mxu0 0
  %1675 = vmatprep.subr.bf16.mxu0 0
  %1676 = vmatpush1.bf16.msra.mxu0 0
  %1677 = vmatprep.subr.bf16.mxu0 0
  %1678 = vmatpush1.bf16.msra.mxu0 0
  %1679 = vmatprep.subr.bf16.mxu0 0
  %1680 = vmatpush1.bf16.msra.mxu0 0
  %1681 = vmatprep.subr.bf16.mxu0 0
  %1682 = vmatpush1.bf16.msra.mxu0 0
  %1683 = vmatprep.subr.bf16.mxu0 0
  %1684 = vmatpush1.bf16.msra.mxu0 %v1532
  %1685 = vmatprep.subr.bf16.mxu0 0
  %1686 = vmatpush2.bf16.msra.mxu0 0
  %1687 = vmatprep.subr.bf16.mxu0 0
  %1688 = vmatpush2.bf16.msra.mxu0 0
  %1689 = vmatprep.subr.bf16.mxu0 0
  %1690 = vmatpush2.bf16.msra.mxu0 0
  %1691 = vmatprep.subr.bf16.mxu0 0
  %1692 = vmatpush2.bf16.msra.mxu0 0
  %1693 = vmatprep.subr.bf16.mxu0 0
  %1694 = vmatpush2.bf16.msra.mxu0 0
  %1695 = vmatprep.subr.bf16.mxu0 0
  %1696 = vmatpush2.bf16.msra.mxu0 0
  %1697 = vmatprep.subr.bf16.mxu0 0
  %1698 = vmatpush2.bf16.msra.mxu0 0
  %1699 = vmatprep.subr.bf16.mxu0 0
  %1700 = vmatpush2.bf16.msra.mxu0 0
  %1701 = vmatprep.mubr.bf16.mxu0 0
  %1702 = vmatmul.mubr.bf16.gmra.mxu0 %v1667
  %v1703 = vpop.f32.mrf.mxu0
  %v1704 = vadd.f32 0.0, %v1703
  %v1705 = vpop.f32.mrf.mxu0
  %v1706 = vpop.f32.mrf.mxu0
  %v1707 = vpop.f32.mrf.mxu0
  %1708 = vdwg.mxu0
  %1710 = vrot.lane.b32.xlu0 %v1614, 96
  %v1711 = vpop.permute.xlu0 %1710
  %1714 = vrot.lane.b32.xlu0 %v1659, 64
  %v1715 = vpop.permute.xlu0 %1714
  %1718 = vrot.lane.b32.xlu0 %v1704, 32
  %v1719 = vpop.permute.xlu0 %1718
  %v1721 = vsel %vm405, %v1569, %v1711
  %v1722 = vsel %vm91, %v1711, %v1715
  %v1723 = vsel %vm414, %v1715, %v1719
  %v1724 = vpack.c.bf16 %v1721, %v1721
  %v1725 = vpack.c.bf16 %v1722, %v1722
  %v1726 = vpack.c.bf16 %v1723, %v1723
  %v1727 = vld [vmem:[%s11] sm:$0xf]
  %v1728 = vld [vmem:[%s11 + $0x4] sm:$0xf]
  %v1729 = vld [vmem:[%s11 + $0x8] sm:$0xf]
  %v1730 = vld [vmem:[%s11 + $0xc] sm:$0xf]
  %v1731 = vld [vmem:[%s11 + $0x10] sm:$0xf]
  %v1732 = vld [vmem:[%s11 + $0x14] sm:$0xf]
  %v1733 = vld [vmem:[%s11 + $0x18] sm:$0xf]
  %v1734 = vld [vmem:[%s11 + $0x1c] sm:$0xf]
  %v1735 = vld [vmem:[%s11 + $0x20] sm:$0xf]
  %v1736 = vld [vmem:[%s11 + $0x24] sm:$0xf]
  %v1737 = vld [vmem:[%s11 + $0x28] sm:$0xf]
  %v1738 = vld [vmem:[%s11 + $0x2c] sm:$0xf]
  %v1739 = vld [vmem:[%s11 + $0x30] sm:$0xf]
  %v1740 = vld [vmem:[%s11 + $0x34] sm:$0xf]
  %v1741 = vld [vmem:[%s11 + $0x38] sm:$0xf]
  %v1742 = vld [vmem:[%s11 + $0x3c] sm:$0xf]
  %v1743 = vld [vmem:[%s11 + $0x40] sm:$0xf]
  %v1744 = vld [vmem:[%s11 + $0x44] sm:$0xf]
  %v1745 = vld [vmem:[%s11 + $0x48] sm:$0xf]
  %v1746 = vld [vmem:[%s11 + $0x4c] sm:$0xf]
  %v1747 = vld [vmem:[%s11 + $0x50] sm:$0xf]
  %v1748 = vld [vmem:[%s11 + $0x54] sm:$0xf]
  %v1749 = vld [vmem:[%s11 + $0x58] sm:$0xf]
  %v1750 = vld [vmem:[%s11 + $0x5c] sm:$0xf]
  %v1751 = vld [vmem:[%s11 + $0x60] sm:$0xf]
  %v1752 = vld [vmem:[%s11 + $0x64] sm:$0xf]
  %v1753 = vld [vmem:[%s11 + $0x68] sm:$0xf]
  %v1754 = vld [vmem:[%s11 + $0x6c] sm:$0xf]
  %v1755 = vld [vmem:[%s11 + $0x70] sm:$0xf]
  %v1756 = vld [vmem:[%s11 + $0x74] sm:$0xf]
  %v1757 = vld [vmem:[%s11 + $0x78] sm:$0xf]
  %v1758 = vld [vmem:[%s11 + $0x7c] sm:$0xf]
  %v1759 = vld [vmem:[%s11 + $0x80] sm:$0xf]
  %v1760 = vld [vmem:[%s11 + $0x84] sm:$0xf]
  %v1761 = vld [vmem:[%s11 + $0x88] sm:$0xf]
  %v1762 = vld [vmem:[%s11 + $0x8c] sm:$0xf]
  %v1763 = vld [vmem:[%s11 + $0x90] sm:$0xf]
  %v1764 = vld [vmem:[%s11 + $0x94] sm:$0xf]
  %v1765 = vld [vmem:[%s11 + $0x98] sm:$0xf]
  %v1766 = vld [vmem:[%s11 + $0x9c] sm:$0xf]
  %v1767 = vld [vmem:[%s11 + $0xa0] sm:$0xf]
  %v1768 = vld [vmem:[%s11 + $0xa4] sm:$0xf]
  %v1769 = vld [vmem:[%s11 + $0xa8] sm:$0xf]
  %v1770 = vld [vmem:[%s11 + $0xac] sm:$0xf]
  %v1771 = vld [vmem:[%s11 + $0xb0] sm:$0xf]
  %v1772 = vld [vmem:[%s11 + $0xb4] sm:$0xf]
  %v1773 = vld [vmem:[%s11 + $0xb8] sm:$0xf]
  %v1774 = vld [vmem:[%s11 + $0xbc] sm:$0xf]
  %v1775 = vld [vmem:[%s12] sm:$0x1]
  %v1777 = vlaneseq
  %v1778 = vshrl.u32 %v1777, 7
  %v1779 = vsub.s32 0, %v1778
  %v1780 = vrot.slane %v1775, %v1779
  %v1830 = vunpack.c.l.b16 %v1727
  %v1831 = vunpack.c.l.b16 %v1728
  %v1832 = vunpack.c.l.b16 %v1729
  %v1833 = vunpack.c.l.b16 %v1730
  %v1834 = vunpack.c.l.b16 %v1731
  %v1835 = vunpack.c.l.b16 %v1732
  %v1836 = vunpack.c.l.b16 %v1733
  %v1837 = vunpack.c.l.b16 %v1734
  %v1838 = vunpack.c.l.b16 %v1735
  %v1839 = vunpack.c.l.b16 %v1736
  %v1840 = vunpack.c.l.b16 %v1737
  %v1841 = vunpack.c.l.b16 %v1738
  %v1842 = vunpack.c.l.b16 %v1739
  %v1843 = vunpack.c.l.b16 %v1740
  %v1844 = vunpack.c.l.b16 %v1741
  %v1845 = vunpack.c.l.b16 %v1742
  %v1846 = vunpack.c.l.b16 %v1743
  %v1847 = vunpack.c.l.b16 %v1744
  %v1848 = vunpack.c.l.b16 %v1745
  %v1849 = vunpack.c.l.b16 %v1746
  %v1850 = vunpack.c.l.b16 %v1747
  %v1851 = vunpack.c.l.b16 %v1748
  %v1852 = vunpack.c.l.b16 %v1749
  %v1853 = vunpack.c.l.b16 %v1750
  %v1854 = vunpack.c.l.b16 %v1751
  %v1855 = vunpack.c.l.b16 %v1752
  %v1856 = vunpack.c.l.b16 %v1753
  %v1857 = vunpack.c.l.b16 %v1754
  %v1858 = vunpack.c.l.b16 %v1755
  %v1859 = vunpack.c.l.b16 %v1756
  %v1860 = vunpack.c.l.b16 %v1757
  %v1861 = vunpack.c.l.b16 %v1758
  %v1862 = vunpack.c.l.b16 %v1759
  %v1863 = vunpack.c.l.b16 %v1760
  %v1864 = vunpack.c.l.b16 %v1761
  %v1865 = vunpack.c.l.b16 %v1762
  %v1866 = vunpack.c.l.b16 %v1763
  %v1867 = vunpack.c.l.b16 %v1764
  %v1868 = vunpack.c.l.b16 %v1765
  %v1869 = vunpack.c.l.b16 %v1766
  %v1870 = vunpack.c.l.b16 %v1767
  %v1871 = vunpack.c.l.b16 %v1768
  %v1872 = vunpack.c.l.b16 %v1769
  %v1873 = vunpack.c.l.b16 %v1770
  %v1874 = vunpack.c.l.b16 %v1771
  %v1875 = vunpack.c.l.b16 %v1772
  %v1876 = vunpack.c.l.b16 %v1773
  %v1877 = vunpack.c.l.b16 %v1774
  %v1878 = vpack.c.b16 %v1831, %v1830
  %v1879 = vpack.c.b16 %v1833, %v1832
  %v1880 = vpack.c.b16 %v1835, %v1834
  %v1881 = vpack.c.b16 %v1837, %v1836
  %v1882 = vpack.c.b16 %v1839, %v1838
  %v1883 = vpack.c.b16 %v1841, %v1840
  %v1884 = vpack.c.b16 %v1843, %v1842
  %v1885 = vpack.c.b16 %v1845, %v1844
  %v1886 = vpack.c.b16 %v1847, %v1846
  %v1887 = vpack.c.b16 %v1849, %v1848
  %v1888 = vpack.c.b16 %v1851, %v1850
  %v1889 = vpack.c.b16 %v1853, %v1852
  %v1890 = vpack.c.b16 %v1855, %v1854
  %v1891 = vpack.c.b16 %v1857, %v1856
  %v1892 = vpack.c.b16 %v1859, %v1858
  %v1893 = vpack.c.b16 %v1861, %v1860
  %v1894 = vpack.c.b16 %v1863, %v1862
  %v1895 = vpack.c.b16 %v1865, %v1864
  %v1896 = vpack.c.b16 %v1867, %v1866
  %v1897 = vpack.c.b16 %v1869, %v1868
  %v1898 = vpack.c.b16 %v1871, %v1870
  %v1899 = vpack.c.b16 %v1873, %v1872
  %v1900 = vpack.c.b16 %v1875, %v1874
  %v1901 = vpack.c.b16 %v1877, %v1876
  %1926 = vmatprep.subr.bf16.mxu0 0
  %1927 = vmatpush1.bf16.msra.mxu0 %v1885
  %1928 = vmatprep.subr.bf16.mxu0 0
  %1929 = vmatpush1.bf16.msra.mxu0 %v1884
  %1930 = vmatprep.subr.bf16.mxu0 0
  %1931 = vmatpush1.bf16.msra.mxu0 %v1883
  %1932 = vmatprep.subr.bf16.mxu0 0
  %1933 = vmatpush1.bf16.msra.mxu0 %v1882
  %1934 = vmatprep.subr.bf16.mxu0 0
  %1935 = vmatpush1.bf16.msra.mxu0 %v1881
  %1936 = vmatprep.subr.bf16.mxu0 0
  %1937 = vmatpush1.bf16.msra.mxu0 %v1880
  %1938 = vmatprep.subr.bf16.mxu0 0
  %1939 = vmatpush1.bf16.msra.mxu0 %v1879
  %1940 = vmatprep.subr.bf16.mxu0 0
  %1941 = vmatpush1.bf16.msra.mxu0 %v1878
  %1942 = vmatprep.subr.bf16.mxu0 0
  %1943 = vmatpush2.bf16.msra.mxu0 %v1893
  %1944 = vmatprep.subr.bf16.mxu0 0
  %1945 = vmatpush2.bf16.msra.mxu0 %v1892
  %1946 = vmatprep.subr.bf16.mxu0 0
  %1947 = vmatpush2.bf16.msra.mxu0 %v1891
  %1948 = vmatprep.subr.bf16.mxu0 0
  %1949 = vmatpush2.bf16.msra.mxu0 %v1890
  %1950 = vmatprep.subr.bf16.mxu0 0
  %1951 = vmatpush2.bf16.msra.mxu0 %v1889
  %1952 = vmatprep.subr.bf16.mxu0 0
  %1953 = vmatpush2.bf16.msra.mxu0 %v1888
  %1954 = vmatprep.subr.bf16.mxu0 0
  %1955 = vmatpush2.bf16.msra.mxu0 %v1887
  %1956 = vmatprep.subr.bf16.mxu0 0
  %1957 = vmatpush2.bf16.msra.mxu0 %v1886
  %1958 = vmatprep.mubr.bf16.mxu0 %v1725
  %1959 = vmatmul.mubr.bf16.gmra.mxu0 %v1724
  %v1960 = vpop.f32.mrf.mxu0
  %v1961 = vadd.f32 %v1780, %v1960
  %v1962 = vpop.f32.mrf.mxu0
  %v1963 = vpop.f32.mrf.mxu0
  %v1964 = vpop.f32.mrf.mxu0
  %1965 = vdwg.mxu0
  %1966 = vmatprep.subr.bf16.mxu0 0
  %1967 = vmatpush1.bf16.msra.mxu0 %v1901
  %1968 = vmatprep.subr.bf16.mxu0 0
  %1969 = vmatpush1.bf16.msra.mxu0 %v1900
  %1970 = vmatprep.subr.bf16.mxu0 0
  %1971 = vmatpush1.bf16.msra.mxu0 %v1899
  %1972 = vmatprep.subr.bf16.mxu0 0
  %1973 = vmatpush1.bf16.msra.mxu0 %v1898
  %1974 = vmatprep.subr.bf16.mxu0 0
  %1975 = vmatpush1.bf16.msra.mxu0 %v1897
  %1976 = vmatprep.subr.bf16.mxu0 0
  %1977 = vmatpush1.bf16.msra.mxu0 %v1896
  %1978 = vmatprep.subr.bf16.mxu0 0
  %1979 = vmatpush1.bf16.msra.mxu0 %v1895
  %1980 = vmatprep.subr.bf16.mxu0 0
  %1981 = vmatpush1.bf16.msra.mxu0 %v1894
  %1982 = vmatprep.subr.bf16.mxu0 0
  %1983 = vmatpush2.bf16.msra.mxu0 0
  %1984 = vmatprep.subr.bf16.mxu0 0
  %1985 = vmatpush2.bf16.msra.mxu0 0
  %1986 = vmatprep.subr.bf16.mxu0 0
  %1987 = vmatpush2.bf16.msra.mxu0 0
  %1988 = vmatprep.subr.bf16.mxu0 0
  %1989 = vmatpush2.bf16.msra.mxu0 0
  %1990 = vmatprep.subr.bf16.mxu0 0
  %1991 = vmatpush2.bf16.msra.mxu0 0
  %1992 = vmatprep.subr.bf16.mxu0 0
  %1993 = vmatpush2.bf16.msra.mxu0 0
  %1994 = vmatprep.subr.bf16.mxu0 0
  %1995 = vmatpush2.bf16.msra.mxu0 0
  %1996 = vmatprep.subr.bf16.mxu0 0
  %1997 = vmatpush2.bf16.msra.mxu0 0
  %1998 = vmatprep.mubr.bf16.mxu0 0
  %1999 = vmatmul.mubr.bf16.gmra.mxu0 %v1726
  %v2000 = vpop.f32.mrf.mxu0
  %v2001 = vadd.f32 %v1961, %v2000
  %v2002 = vpop.f32.mrf.mxu0
  %v2003 = vpop.f32.mrf.mxu0
  %v2004 = vpop.f32.mrf.mxu0
  %2005 = vdwg.mxu0
  %vm2006 = vcmask 519168
  %v2007 = vsel %vm2006, %v2001, 0.0
  %v2008 = vrot.slane %v2007, 4
  %v2009 = vadd.f32 %v2007, %v2008
  %v2010 = vrot.slane %v2009, 2
  %v2011 = vadd.f32 %v2009, %v2010
  %v2012 = vrot.slane %v2011, 1
  %v2013 = vadd.f32 %v2011, %v2012
  %v2014 = vmul.f32 %v2013, 0.25
  %v2015 = vld [vmem:[%s13] sm:$0xff]
  %v2016 = vld [vmem:[%s13 + $0x8] sm:$0xff]
  %v2017 = vld [vmem:[%s13 + $0x10] sm:$0xff]
  %v2018 = vld [vmem:[%s13 + $0x18] sm:$0xff]
  %v2019 = vld [vmem:[%s13 + $0x20] sm:$0xff]
  %v2020 = vld [vmem:[%s13 + $0x28] sm:$0xff]
  %v2021 = vld [vmem:[%s13 + $0x30] sm:$0xff]
  %v2022 = vld [vmem:[%s13 + $0x38] sm:$0xff]
  %v2024 = vsel %vm91, %v2014, 0
  %2026 = vmatprep.subr.mxu0 0.0
  %2027 = vmatpush1.msra.mxu0 0.0
  %2028 = vmatprep.subr.mxu0 0.0
  %2029 = vmatpush1.msra.mxu0 0.0
  %2030 = vmatprep.subr.mxu0 0.0
  %2031 = vmatpush1.msra.mxu0 0.0
  %2032 = vmatprep.subr.mxu0 0.0
  %2033 = vmatpush1.msra.mxu0 0.0
  %2034 = vmatprep.subr.mxu0 0.0
  %2035 = vmatpush1.msra.mxu0 0.0
  %2036 = vmatprep.subr.mxu0 0.0
  %2037 = vmatpush1.msra.mxu0 0.0
  %2038 = vmatprep.subr.mxu0 0.0
  %2039 = vmatpush1.msra.mxu0 0.0
  %2040 = vmatprep.subr.mxu0 0.0
  %2041 = vmatpush1.msra.mxu0 0.0
  %2042 = vmatprep.subr.mxu0 0.0
  %2043 = vmatpush1.msra.mxu0 %v2022
  %2044 = vmatprep.subr.mxu0 0.0
  %2045 = vmatpush1.msra.mxu0 %v2021
  %2046 = vmatprep.subr.mxu0 0.0
  %2047 = vmatpush1.msra.mxu0 %v2020
  %2048 = vmatprep.subr.mxu0 0.0
  %2049 = vmatpush1.msra.mxu0 %v2019
  %2050 = vmatprep.subr.mxu0 0.0
  %2051 = vmatpush1.msra.mxu0 %v2018
  %2052 = vmatprep.subr.mxu0 0.0
  %2053 = vmatpush1.msra.mxu0 %v2017
  %2054 = vmatprep.subr.mxu0 0.0
  %2055 = vmatpush1.msra.mxu0 %v2016
  %2056 = vmatprep.subr.mxu0 0.0
  %2057 = vmatpush1.msra.mxu0 %v2015
  %2058 = vmatprep.subr.mxu0 0.0
  %2059 = vmatpush2.msra.mxu0 0.0
  %2060 = vmatprep.subr.mxu0 0.0
  %2061 = vmatpush2.msra.mxu0 0.0
  %2062 = vmatprep.subr.mxu0 0.0
  %2063 = vmatpush2.msra.mxu0 0.0
  %2064 = vmatprep.subr.mxu0 0.0
  %2065 = vmatpush2.msra.mxu0 0.0
  %2066 = vmatprep.subr.mxu0 0.0
  %2067 = vmatpush2.msra.mxu0 0.0
  %2068 = vmatprep.subr.mxu0 0.0
  %2069 = vmatpush2.msra.mxu0 0.0
  %2070 = vmatprep.subr.mxu0 0.0
  %2071 = vmatpush2.msra.mxu0 0.0
  %2072 = vmatprep.subr.mxu0 0.0
  %2073 = vmatpush2.msra.mxu0 0.0
  %2074 = vmatprep.subr.mxu0 0.0
  %2075 = vmatpush2.msra.mxu0 0.0
  %2076 = vmatprep.subr.mxu0 0.0
  %2077 = vmatpush2.msra.mxu0 0.0
  %2078 = vmatprep.subr.mxu0 0.0
  %2079 = vmatpush2.msra.mxu0 0.0
  %2080 = vmatprep.subr.mxu0 0.0
  %2081 = vmatpush2.msra.mxu0 0.0
  %2082 = vmatprep.subr.mxu0 0.0
  %2083 = vmatpush2.msra.mxu0 0.0
  %2084 = vmatprep.subr.mxu0 0.0
  %2085 = vmatpush2.msra.mxu0 0.0
  %2086 = vmatprep.subr.mxu0 0.0
  %2087 = vmatpush2.msra.mxu0 0.0
  %2088 = vmatprep.subr.mxu0 0.0
  %2089 = vmatpush2.msra.mxu0 0.0
  %2090 = vmatprep.mubr.f32.mxu0 0.0
  %2091 = vmatmul.mubr.f32.gmra.mxu0 %v2024
  %v2092 = vpop.f32.mrf.mxu0
  %v2093 = vadd.f32 0.0, %v2092
  %v2094 = vpop.f32.mrf.mxu0
  %2095 = vdwg.mxu0
  %v2096 = vlaneseq
  %v2097 = vshrl.u32 %v2096, 7
  %v2098 = vsub.s32 0, %v2097
  %v2099 = vrot.slane %v2093, %v2098
  %v2100 = vsub.f32 %v2001, %v2099
  %v2101 = vmul.f32 %v2100, %v2100
  %v2102 = vsel %vm2006, %v2101, 0.0
  %v2103 = vrot.slane %v2102, 4
  %v2104 = vadd.f32 %v2102, %v2103
  %v2105 = vrot.slane %v2104, 2
  %v2106 = vadd.f32 %v2104, %v2105
  %v2107 = vrot.slane %v2106, 1
  %v2108 = vadd.f32 %v2106, %v2107
  %v2109 = vmul.f32 %v2108, 0.25
  %v2110 = vld [vmem:[%s14] sm:$0x1]
  %v2112 = vsel %vm91, %v2109, 0
  %2114 = vmatprep.subr.mxu0 0.0
  %2115 = vmatpush1.msra.mxu0 0.0
  %2116 = vmatprep.subr.mxu0 0.0
  %2117 = vmatpush1.msra.mxu0 0.0
  %2118 = vmatprep.subr.mxu0 0.0
  %2119 = vmatpush1.msra.mxu0 0.0
  %2120 = vmatprep.subr.mxu0 0.0
  %2121 = vmatpush1.msra.mxu0 0.0
  %2122 = vmatprep.subr.mxu0 0.0
  %2123 = vmatpush1.msra.mxu0 0.0
  %2124 = vmatprep.subr.mxu0 0.0
  %2125 = vmatpush1.msra.mxu0 0.0
  %2126 = vmatprep.subr.mxu0 0.0
  %2127 = vmatpush1.msra.mxu0 0.0
  %2128 = vmatprep.subr.mxu0 0.0
  %2129 = vmatpush1.msra.mxu0 0.0
  %2130 = vmatprep.subr.mxu0 0.0
  %2131 = vmatpush1.msra.mxu0 %v2022
  %2132 = vmatprep.subr.mxu0 0.0
  %2133 = vmatpush1.msra.mxu0 %v2021
  %2134 = vmatprep.subr.mxu0 0.0
  %2135 = vmatpush1.msra.mxu0 %v2020
  %2136 = vmatprep.subr.mxu0 0.0
  %2137 = vmatpush1.msra.mxu0 %v2019
  %2138 = vmatprep.subr.mxu0 0.0
  %2139 = vmatpush1.msra.mxu0 %v2018
  %2140 = vmatprep.subr.mxu0 0.0
  %2141 = vmatpush1.msra.mxu0 %v2017
  %2142 = vmatprep.subr.mxu0 0.0
  %2143 = vmatpush1.msra.mxu0 %v2016
  %2144 = vmatprep.subr.mxu0 0.0
  %2145 = vmatpush1.msra.mxu0 %v2015
  %2146 = vmatprep.subr.mxu0 0.0
  %2147 = vmatpush2.msra.mxu0 0.0
  %2148 = vmatprep.subr.mxu0 0.0
  %2149 = vmatpush2.msra.mxu0 0.0
  %2150 = vmatprep.subr.mxu0 0.0
  %2151 = vmatpush2.msra.mxu0 0.0
  %2152 = vmatprep.subr.mxu0 0.0
  %2153 = vmatpush2.msra.mxu0 0.0
  %2154 = vmatprep.subr.mxu0 0.0
  %2155 = vmatpush2.msra.mxu0 0.0
  %2156 = vmatprep.subr.mxu0 0.0
  %2157 = vmatpush2.msra.mxu0 0.0
  %2158 = vmatprep.subr.mxu0 0.0
  %2159 = vmatpush2.msra.mxu0 0.0
  %2160 = vmatprep.subr.mxu0 0.0
  %2161 = vmatpush2.msra.mxu0 0.0
  %2162 = vmatprep.subr.mxu0 0.0
  %2163 = vmatpush2.msra.mxu0 0.0
  %2164 = vmatprep.subr.mxu0 0.0
  %2165 = vmatpush2.msra.mxu0 0.0
  %2166 = vmatprep.subr.mxu0 0.0
  %2167 = vmatpush2.msra.mxu0 0.0
  %2168 = vmatprep.subr.mxu0 0.0
  %2169 = vmatpush2.msra.mxu0 0.0
  %2170 = vmatprep.subr.mxu0 0.0
  %2171 = vmatpush2.msra.mxu0 0.0
  %2172 = vmatprep.subr.mxu0 0.0
  %2173 = vmatpush2.msra.mxu0 0.0
  %2174 = vmatprep.subr.mxu0 0.0
  %2175 = vmatpush2.msra.mxu0 0.0
  %2176 = vmatprep.subr.mxu0 0.0
  %2177 = vmatpush2.msra.mxu0 0.0
  %2178 = vmatprep.mubr.f32.mxu0 0.0
  %2179 = vmatmul.mubr.f32.gmra.mxu0 %v2112
  %v2180 = vpop.f32.mrf.mxu0
  %v2181 = vadd.f32 1e-05, %v2180
  %v2182 = vpop.f32.mrf.mxu0
  %2183 = vdwg.mxu0
  %v2184 = vrsqrt.pop %v2181
  %v2185 = vmul.f32 %v2110, %v2184
  %v2187 = vlaneseq
  %v2188 = vshrl.u32 %v2187, 7
  %v2189 = vsub.s32 0, %v2188
  %v2190 = vrot.slane %v2185, %v2189
  %v2192 = vmul.f32 %v2100, %v2190
  %v2193 = vld [vmem:[%s15] sm:$0x1]
  %v2195 = vlaneseq
  %v2196 = vshrl.u32 %v2195, 7
  %v2197 = vsub.s32 0, %v2196
  %v2198 = vrot.slane %v2193, %v2197
  %v2200 = vadd.f32 %v2192, %v2198
  %v2201 = vmul.f32 %v2200, 0.2
  %v2202 = vmax.f32 %v2200, %v2201
  %v2203 = vpack.c.bf16 %v2202, %v2202
  %v2204 = vld [vmem:[%s16] sm:$0x1]
  %vm2205 = vcmask 31744
  %v2207 = vsel %vm2205, %v2204, 0
  %vm2209 = vcmask 1041408
  %v2211 = vsel %vm2209, %v2203, 0
  %2213 = vmatprep.subr.bf16.mxu0 0
  %2214 = vmatpush1.bf16.msra.mxu0 0
  %2215 = vmatprep.subr.bf16.mxu0 0
  %2216 = vmatpush1.bf16.msra.mxu0 0
  %2217 = vmatprep.subr.bf16.mxu0 0
  %2218 = vmatpush1.bf16.msra.mxu0 0
  %2219 = vmatprep.subr.bf16.mxu0 0
  %2220 = vmatpush1.bf16.msra.mxu0 0
  %2221 = vmatprep.subr.bf16.mxu0 0
  %2222 = vmatpush1.bf16.msra.mxu0 0
  %2223 = vmatprep.subr.bf16.mxu0 0
  %2224 = vmatpush1.bf16.msra.mxu0 0
  %2225 = vmatprep.subr.bf16.mxu0 0
  %2226 = vmatpush1.bf16.msra.mxu0 0
  %2227 = vmatprep.subr.bf16.mxu0 0
  %2228 = vmatpush1.bf16.msra.mxu0 %v2211
  %2229 = vmatprep.subr.bf16.mxu0 0
  %2230 = vmatpush2.bf16.msra.mxu0 0
  %2231 = vmatprep.subr.bf16.mxu0 0
  %2232 = vmatpush2.bf16.msra.mxu0 0
  %2233 = vmatprep.subr.bf16.mxu0 0
  %2234 = vmatpush2.bf16.msra.mxu0 0
  %2235 = vmatprep.subr.bf16.mxu0 0
  %2236 = vmatpush2.bf16.msra.mxu0 0
  %2237 = vmatprep.subr.bf16.mxu0 0
  %2238 = vmatpush2.bf16.msra.mxu0 0
  %2239 = vmatprep.subr.bf16.mxu0 0
  %2240 = vmatpush2.bf16.msra.mxu0 0
  %2241 = vmatprep.subr.bf16.mxu0 0
  %2242 = vmatpush2.bf16.msra.mxu0 0
  %2243 = vmatprep.subr.bf16.mxu0 0
  %2244 = vmatpush2.bf16.msra.mxu0 0
  %2245 = vmatprep.mubr.bf16.mxu0 0
  %2246 = vmatmul.mubr.bf16.gmra.mxu0 %v2207
  %v2247 = vpop.f32.mrf.mxu0
  %v2248 = vadd.f32 0.0, %v2247
  %v2249 = vpop.f32.mrf.mxu0
  %v2250 = vpop.f32.mrf.mxu0
  %v2251 = vpop.f32.mrf.mxu0
  %2252 = vdwg.mxu0
  %s2253 = scalar_lea.vmem %s16, 1
  %v2254 = vld [vmem:[%s2253] sm:$0x1]
  %v2256 = vsel %vm2205, %v2254, 0
  %2258 = vmatprep.subr.bf16.mxu0 0
  %2259 = vmatpush1.bf16.msra.mxu0 0
  %2260 = vmatprep.subr.bf16.mxu0 0
  %2261 = vmatpush1.bf16.msra.mxu0 0
  %2262 = vmatprep.subr.bf16.mxu0 0
  %2263 = vmatpush1.bf16.msra.mxu0 0
  %2264 = vmatprep.subr.bf16.mxu0 0
  %2265 = vmatpush1.bf16.msra.mxu0 0
  %2266 = vmatprep.subr.bf16.mxu0 0
  %2267 = vmatpush1.bf16.msra.mxu0 0
  %2268 = vmatprep.subr.bf16.mxu0 0
  %2269 = vmatpush1.bf16.msra.mxu0 0
  %2270 = vmatprep.subr.bf16.mxu0 0
  %2271 = vmatpush1.bf16.msra.mxu0 0
  %2272 = vmatprep.subr.bf16.mxu0 0
  %2273 = vmatpush1.bf16.msra.mxu0 %v2211
  %2274 = vmatprep.subr.bf16.mxu0 0
  %2275 = vmatpush2.bf16.msra.mxu0 0
  %2276 = vmatprep.subr.bf16.mxu0 0
  %2277 = vmatpush2.bf16.msra.mxu0 0
  %2278 = vmatprep.subr.bf16.mxu0 0
  %2279 = vmatpush2.bf16.msra.mxu0 0
  %2280 = vmatprep.subr.bf16.mxu0 0
  %2281 = vmatpush2.bf16.msra.mxu0 0
  %2282 = vmatprep.subr.bf16.mxu0 0
  %2283 = vmatpush2.bf16.msra.mxu0 0
  %2284 = vmatprep.subr.bf16.mxu0 0
  %2285 = vmatpush2.bf16.msra.mxu0 0
  %2286 = vmatprep.subr.bf16.mxu0 0
  %2287 = vmatpush2.bf16.msra.mxu0 0
  %2288 = vmatprep.subr.bf16.mxu0 0
  %2289 = vmatpush2.bf16.msra.mxu0 0
  %2290 = vmatprep.mubr.bf16.mxu0 0
  %2291 = vmatmul.mubr.bf16.gmra.mxu0 %v2256
  %v2292 = vpop.f32.mrf.mxu0
  %v2293 = vadd.f32 0.0, %v2292
  %v2294 = vpop.f32.mrf.mxu0
  %v2295 = vpop.f32.mrf.mxu0
  %v2296 = vpop.f32.mrf.mxu0
  %2297 = vdwg.mxu0
  %2299 = vrot.lane.b32.xlu0 %v2293, 64
  %v2300 = vpop.permute.xlu0 %2299
  %v2302 = vsel %vm91, %v2248, %v2300
  %v2303 = vpack.c.bf16 %v2302, %v2302
  %v2304 = vld [vmem:[%s17] sm:$0xf]
  %v2305 = vld [vmem:[%s17 + $0x4] sm:$0xf]
  %v2306 = vld [vmem:[%s17 + $0x8] sm:$0xf]
  %v2307 = vld [vmem:[%s17 + $0xc] sm:$0xf]
  %v2308 = vld [vmem:[%s17 + $0x10] sm:$0xf]
  %v2309 = vld [vmem:[%s17 + $0x14] sm:$0xf]
  %v2310 = vld [vmem:[%s17 + $0x18] sm:$0xf]
  %v2311 = vld [vmem:[%s17 + $0x1c] sm:$0xf]
  %v2312 = vld [vmem:[%s17 + $0x20] sm:$0xf]
  %v2313 = vld [vmem:[%s17 + $0x24] sm:$0xf]
  %v2314 = vld [vmem:[%s17 + $0x28] sm:$0xf]
  %v2315 = vld [vmem:[%s17 + $0x2c] sm:$0xf]
  %v2316 = vld [vmem:[%s17 + $0x30] sm:$0xf]
  %v2317 = vld [vmem:[%s17 + $0x34] sm:$0xf]
  %v2318 = vld [vmem:[%s17 + $0x38] sm:$0xf]
  %v2319 = vld [vmem:[%s17 + $0x3c] sm:$0xf]
  %v2320 = vld [vmem:[#allocation2] sm:$0x1]
  %v2322 = vlaneseq
  %v2323 = vshrl.u32 %v2322, 7
  %v2324 = vsub.s32 0, %v2323
  %v2325 = vrot.slane %v2320, %v2324
  %v2343 = vunpack.c.l.b16 %v2304
  %v2344 = vunpack.c.l.b16 %v2305
  %v2345 = vunpack.c.l.b16 %v2306
  %v2346 = vunpack.c.l.b16 %v2307
  %v2347 = vunpack.c.l.b16 %v2308
  %v2348 = vunpack.c.l.b16 %v2309
  %v2349 = vunpack.c.l.b16 %v2310
  %v2350 = vunpack.c.l.b16 %v2311
  %v2351 = vunpack.c.l.b16 %v2312
  %v2352 = vunpack.c.l.b16 %v2313
  %v2353 = vunpack.c.l.b16 %v2314
  %v2354 = vunpack.c.l.b16 %v2315
  %v2355 = vunpack.c.l.b16 %v2316
  %v2356 = vunpack.c.l.b16 %v2317
  %v2357 = vunpack.c.l.b16 %v2318
  %v2358 = vunpack.c.l.b16 %v2319
  %v2359 = vpack.c.b16 %v2344, %v2343
  %v2360 = vpack.c.b16 %v2346, %v2345
  %v2361 = vpack.c.b16 %v2348, %v2347
  %v2362 = vpack.c.b16 %v2350, %v2349
  %v2363 = vpack.c.b16 %v2352, %v2351
  %v2364 = vpack.c.b16 %v2354, %v2353
  %v2365 = vpack.c.b16 %v2356, %v2355
  %v2366 = vpack.c.b16 %v2358, %v2357
  %2375 = vmatprep.subr.bf16.mxu0 0
  %2376 = vmatpush1.bf16.msra.mxu0 %v2366
  %2377 = vmatprep.subr.bf16.mxu0 0
  %2378 = vmatpush1.bf16.msra.mxu0 %v2365
  %2379 = vmatprep.subr.bf16.mxu0 0
  %2380 = vmatpush1.bf16.msra.mxu0 %v2364
  %2381 = vmatprep.subr.bf16.mxu0 0
  %2382 = vmatpush1.bf16.msra.mxu0 %v2363
  %2383 = vmatprep.subr.bf16.mxu0 0
  %2384 = vmatpush1.bf16.msra.mxu0 %v2362
  %2385 = vmatprep.subr.bf16.mxu0 0
  %2386 = vmatpush1.bf16.msra.mxu0 %v2361
  %2387 = vmatprep.subr.bf16.mxu0 0
  %2388 = vmatpush1.bf16.msra.mxu0 %v2360
  %2389 = vmatprep.subr.bf16.mxu0 0
  %2390 = vmatpush1.bf16.msra.mxu0 %v2359
  %2391 = vmatprep.subr.bf16.mxu0 0
  %2392 = vmatpush2.bf16.msra.mxu0 0
  %2393 = vmatprep.subr.bf16.mxu0 0
  %2394 = vmatpush2.bf16.msra.mxu0 0
  %2395 = vmatprep.subr.bf16.mxu0 0
  %2396 = vmatpush2.bf16.msra.mxu0 0
  %2397 = vmatprep.subr.bf16.mxu0 0
  %2398 = vmatpush2.bf16.msra.mxu0 0
  %2399 = vmatprep.subr.bf16.mxu0 0
  %2400 = vmatpush2.bf16.msra.mxu0 0
  %2401 = vmatprep.subr.bf16.mxu0 0
  %2402 = vmatpush2.bf16.msra.mxu0 0
  %2403 = vmatprep.subr.bf16.mxu0 0
  %2404 = vmatpush2.bf16.msra.mxu0 0
  %2405 = vmatprep.subr.bf16.mxu0 0
  %2406 = vmatpush2.bf16.msra.mxu0 0
  %2407 = vmatprep.mubr.bf16.mxu0 0
  %2408 = vmatmul.mubr.bf16.gmra.mxu0 %v2303
  %v2409 = vpop.f32.mrf.mxu0
  %v2410 = vadd.f32 %v2325, %v2409
  %v2411 = vpop.f32.mrf.mxu0
  %v2412 = vpop.f32.mrf.mxu0
  %v2413 = vpop.f32.mrf.mxu0
  %2414 = vdwg.mxu0
  %v2415 = vsub.f32 0.0, %v2410
  %v2416 = vmul.f32 %v2415, 1.442695
  %v2417 = vpow.pop %v2416
  %v2418 = vadd.f32 %v2417, 1.0
  %v2419 = vrcp.pop %v2418
  %v2420 = vmul.f32 1.0, %v2419
  %vm2421 = vcmask 1024
  %2422 = vst.msk [vmem:[%s19] sm:$0x3] %vm2421, %v2420
  // Predicated region
  $region78: #{discriminator_forward.1} parent=0 // pred_check
    _
  $region79: #{discriminator_forward.1} parent=0 // pred_check_branch
    %2424 = sbr.rel (0) target = $region81
  $region80: #{discriminator_forward.1} parent=0 // pred_region
    _
  $region81: #{discriminator_forward.1} parent=0 // pred_fallthru
    _
  // Predicated region
  $region82: #{discriminator_forward.1} parent=0 // pred_check
    _
  $region83: #{discriminator_forward.1} parent=0 // pred_check_branch
    %2426 = sbr.rel (0) target = $region85
  $region84: #{discriminator_forward.1} parent=0 // pred_region
    _
  $region85: #{discriminator_forward.1} parent=0 // pred_fallthru
    _

</llo_original>
